<compile_context>
chip_gen: v5e
topology: v5e:2x2
jax: 0.10.0
libtpu: 0.0.40
codegen_flags: <defaults>
</compile_context>

<pallas_src>
import jax
import jax.numpy as jnp
import numpy as np
from jax import lax
from jax.experimental import pallas as pl
from jax.experimental.pallas import tpu as pltpu


def _recurrence_kernel(x_ref, wih_ref, whh_f_ref, whh_b_ref, b_ref,
                       rec_ref, g_ref):
    """Fused BiLSTM recurrence.

    x_ref     : (T, B, I)
    wih_ref   : (I, 8H)   [fwd 4H | bwd 4H]  (PyTorch weight_ih transposed, both dirs)
    whh_*_ref : (H, 4H)   (PyTorch weight_hh transposed)
    b_ref     : (1, 8H)   [fwd bias_ih+bias_hh | bwd bias_ih+bias_hh]
    rec_ref   : (T, B, 2H) output: [:, :, :H] = h_fwd(t), [:, :, H:] = h_bwd(t)
    g_ref     : (T, B, 8H) scratch: precomputed input projections (+ bias)
    """
    T, B, I = x_ref.shape
    H = whh_f_ref.shape[0]
    G = 4 * H

    # (1) Hoisted input projection for BOTH directions: one large MXU-filling matmul,
    #     bias folded in once (no per-step broadcast inside the loop).
    x_flat = x_ref[...].reshape(T * B, I)
    gp = jnp.dot(x_flat, wih_ref[...], preferred_element_type=jnp.float32) + b_ref[...]
    g_ref[...] = gp.reshape(T, B, 2 * G)

    # Hoist recurrent weights out of the loop.
    whh_f = whh_f_ref[...]
    whh_b = whh_b_ref[...]

    def act(gates, c):
        # PyTorch gate order: i, f, g, o.  (For H >= 128 these slices are lane-aligned.)
        i = jax.nn.sigmoid(gates[:, 0:H])
        f = jax.nn.sigmoid(gates[:, H:2 * H])
        g = jnp.tanh(gates[:, 2 * H:3 * H])
        o = jax.nn.sigmoid(gates[:, 3 * H:4 * H])
        c_new = f * c + i * g
        h_new = o * jnp.tanh(c_new)        # tanh(c_new) computed exactly once
        return h_new, c_new

    zeros = jnp.zeros((B, H), jnp.float32)

    # (2) Fused fwd/bwd recurrence: two independent dependency chains in one body so the
    #     scheduler overlaps one direction's matmul with the other's EUP/VPU work.
    def body(s, carry):
        h_f, c_f, h_b, c_b = carry
        t_b = T - 1 - s
        gates_f = g_ref[s, :, 0:G] + jnp.dot(
            h_f, whh_f, preferred_element_type=jnp.float32)
        gates_b = g_ref[t_b, :, G:2 * G] + jnp.dot(
            h_b, whh_b, preferred_element_type=jnp.float32)
        h_f, c_f = act(gates_f, c_f)
        h_b, c_b = act(gates_b, c_b)
        # Both directions land in one (T, B, 2H) buffer -> single (T*B, 2H) embedding
        # operand; leading-axis indexed stores (no dynamic t*B sublane offsets).
        rec_ref[s, :, 0:H] = h_f
        rec_ref[t_b, :, H:2 * H] = h_b
        return h_f, c_f, h_b, c_b

    unroll = True if T <= 32 else 4
    lax.fori_loop(0, T, body, (zeros, zeros, zeros, zeros), unroll=unroll)


def _embed_logsoftmax_kernel(rec_ref, wemb_ref, bemb_ref, out_ref):
    """Tiled embedding + log_softmax.

    rec_ref  : (tm, 2H)
    wemb_ref : (2H, O_pad)   (padded class columns are zero)
    bemb_ref : (1, O_pad)    (padded class bias = -1e30 -> never affects max/sum)
    out_ref  : (tm, O_pad)   lane-dense, unmasked stores
    """
    logits = (jnp.dot(rec_ref[...], wemb_ref[...], preferred_element_type=jnp.float32)
              + bemb_ref[...])
    m = jnp.max(logits, axis=-1, keepdims=True)
    sh = logits - m
    out_ref[...] = sh - jnp.log(jnp.sum(jnp.exp(sh), axis=-1, keepdims=True))


def bidirectional_forward(x, params):
    """x: (T, B, I) -> (T, B, O) log-probabilities."""
    T, B, I = x.shape
    H = params["whh_f"].shape[0]
    O = params["wemb"].shape[1]

    # Pack both directions' input weights / biases so the input projection is ONE matmul.
    wih = jnp.concatenate([params["wih_f"], params["wih_b"]], axis=1)   # (I, 8H)
    b = jnp.concatenate([params["b_f"], params["b_b"]], axis=1)         # (1, 8H)

    # Explicit VMEM budget for the whole-array-resident recurrence kernel.
    est_bytes = 4 * (x.size + wih.size + params["whh_f"].size + params["whh_b"].size
                     + b.size + T * B * 2 * H + T * B * 8 * H)
    vmem_limit = int(min(100 * 1024 * 1024, max(32 * 1024 * 1024, 2 * est_bytes)))

    rec = pl.pallas_call(
        _recurrence_kernel,
        out_shape=jax.ShapeDtypeStruct((T, B, 2 * H), jnp.float32),
        in_specs=[pl.BlockSpec(memory_space=pltpu.MemorySpace.VMEM)] * 5,
        out_specs=pl.BlockSpec(memory_space=pltpu.MemorySpace.VMEM),
        scratch_shapes=[pltpu.VMEM((T, B, 8 * H), jnp.float32)],
        compiler_params=pltpu.CompilerParams(vmem_limit_bytes=vmem_limit),
    )(x, wih, params["whh_f"], params["whh_b"], b)

    # Pad the class dimension to a multiple of 128 so the output stores are lane-dense.
    O_pad = ((O + 127) // 128) * 128
    wemb_p = jnp.zeros((2 * H, O_pad), jnp.float32).at[:, :O].set(params["wemb"])
    bemb_p = jnp.full((1, O_pad), -1e30, jnp.float32).at[:, :O].set(params["bemb"])

    TB = T * B
    tm = TB
    for cand in (512, 256, 128, 64, 32, 16, 8):
        if TB % cand == 0:
            tm = cand
            break

    rec_flat = rec.reshape(TB, 2 * H)
    out_pad = pl.pallas_call(
        _embed_logsoftmax_kernel,
        out_shape=jax.ShapeDtypeStruct((TB, O_pad), jnp.float32),
        grid=(TB // tm,),
        in_specs=[pl.BlockSpec((tm, 2 * H), lambda i: (i, 0)),
                  pl.BlockSpec((2 * H, O_pad), lambda i: (0, 0)),
                  pl.BlockSpec((1, O_pad), lambda i: (0, 0))],
        out_specs=pl.BlockSpec((tm, O_pad), lambda i: (i, 0)),
        compiler_params=pltpu.CompilerParams(
            dimension_semantics=("parallel",)),
    )(rec_flat, wemb_p, bemb_p)

    return out_pad[:, :O].reshape(T, B, O)


def init_params(key, inp, hidden, out):
    """Deterministic synthetic parameters (PyTorch-style uniform(-k, k), k=1/sqrt(H))."""
    k = 1.0 / np.sqrt(hidden)
    keys = jax.random.split(key, 11)
    u = lambda kk, shape: jax.random.uniform(kk, shape, jnp.float32, -k, k)
    params = {
        # forward direction (weights stored transposed for x @ W)
        "wih_f": u(keys[0], (inp, 4 * hidden)),
        "whh_f": u(keys[1], (hidden, 4 * hidden)),
        "b_f":   u(keys[2], (1, 4 * hidden)) + u(keys[3], (1, 4 * hidden)),  # b_ih + b_hh
        # reverse direction
        "wih_b": u(keys[4], (inp, 4 * hidden)),
        "whh_b": u(keys[5], (hidden, 4 * hidden)),
        "b_b":   u(keys[6], (1, 4 * hidden)) + u(keys[7], (1, 4 * hidden)),
        # embedding Linear(2H, out), transposed
        "wemb":  u(keys[8], (2 * hidden, out)),
        "bemb":  u(keys[9], (1, out)),
    }
    return params


def reference_forward(x, params):
    """Pure-JAX reference reproducing PyTorch BiLSTM + Linear + log_softmax."""
    H = params["whh_f"].shape[0]
    B = x.shape[1]

    def make_cell(wih, whh, b):
        def cell(carry, x_t):
            h, c = carry
            g = x_t @ wih + h @ whh + b[0]
            i = jax.nn.sigmoid(g[:, :H])
            f = jax.nn.sigmoid(g[:, H:2 * H])
            gg = jnp.tanh(g[:, 2 * H:3 * H])
            o = jax.nn.sigmoid(g[:, 3 * H:])
            c = f * c + i * gg
            h = o * jnp.tanh(c)
            return (h, c), h
        return cell

    zeros = jnp.zeros((B, H), jnp.float32)
    _, hf = lax.scan(make_cell(params["wih_f"], params["whh_f"], params["b_f"]),
                     (zeros, zeros), x)
    _, hb = lax.scan(make_cell(params["wih_b"], params["whh_b"], params["b_b"]),
                     (zeros, zeros), x[::-1])
    hb = hb[::-1]
    rec = jnp.concatenate([hf, hb], axis=-1)
    logits = rec @ params["wemb"] + params["bemb"][0]
    return jax.nn.log_softmax(logits, axis=-1)


if __name__ == "__main__":
    T, B, INP, HID, OUT = 8, 2, 16, 32, 16
    key = jax.random.PRNGKey(0)
    kx, kp = jax.random.split(key)
    x = jax.random.normal(kx, (T, B, INP), jnp.float32)
    params = init_params(kp, INP, HID, OUT)

    out = bidirectional_forward(x, params)
    out = jax.block_until_ready(out)

    ref = jax.block_until_ready(reference_forward(x, params))
    assert out.shape == (T, B, OUT), out.shape
    if not np.allclose(np.asarray(out), np.asarray(ref), atol=1e-5, rtol=1e-5):
        raise AssertionError("Pallas kernel output does not match JAX reference")

    print("KERNEL_OK")
</pallas_src>

<mosaic_0001>
module attributes {stable_mosaic.version = 11 : i64} {
  func.func @_recurrence_kernel(%arg0: memref<8x2x16xf32, #tpu.memory_space<vmem>>, %arg1: memref<16x256xf32, #tpu.memory_space<vmem>>, %arg2: memref<32x128xf32, #tpu.memory_space<vmem>>, %arg3: memref<32x128xf32, #tpu.memory_space<vmem>>, %arg4: memref<1x256xf32, #tpu.memory_space<vmem>>, %arg5: memref<8x2x64xf32, #tpu.memory_space<vmem>>, %arg6: memref<8x2x256xf32, #tpu.memory_space<vmem>>) attributes {dimension_semantics = [], scalar_prefetch = 0 : i64, scratch_operands = 1 : i64, tpu.core_type = #tpu.core_type<tc>} {
    %c0 = arith.constant 0 : index
    %c0_0 = arith.constant 0 : index
    %c0_1 = arith.constant 0 : index
    %0 = vector.load %arg0[%c0, %c0_0, %c0_1] : memref<8x2x16xf32, #tpu.memory_space<vmem>>, vector<8x2x16xf32>
    %1 = vector.shape_cast %0 : vector<8x2x16xf32> to vector<16x16xf32>
    %c0_2 = arith.constant 0 : index
    %c0_3 = arith.constant 0 : index
    %2 = vector.load %arg1[%c0_2, %c0_3] : memref<16x256xf32, #tpu.memory_space<vmem>>, vector<16x256xf32>
    %cst = arith.constant dense<0.000000e+00> : vector<16x256xf32>
    %3 = tpu.matmul %1, %2, %cst {dimension_numbers = #tpu.dot_dimension_numbers<[1], [0], [0], [1], [0, 0, 1, 1], [], []>} : vector<16x16xf32>, vector<16x256xf32>, vector<16x256xf32> -> vector<16x256xf32>
    %c0_4 = arith.constant 0 : index
    %c0_5 = arith.constant 0 : index
    %4 = vector.load %arg4[%c0_4, %c0_5] : memref<1x256xf32, #tpu.memory_space<vmem>>, vector<1x256xf32>
    %5 = vector.broadcast %4 : vector<1x256xf32> to vector<16x256xf32>
    %6 = arith.addf %3, %5 : vector<16x256xf32>
    %7 = vector.shape_cast %6 : vector<16x256xf32> to vector<8x2x256xf32>
    %c0_6 = arith.constant 0 : index
    %c0_7 = arith.constant 0 : index
    %c0_8 = arith.constant 0 : index
    %8 = vector.load %arg6[%c0_6, %c0_7, %c0_8] : memref<8x2x256xf32, #tpu.memory_space<vmem>>, vector<8x2x256xf32>
    tpu.vector_store %arg6[%c0_6, %c0_7, %c0_8], %7 {strides = array<i32>} : memref<8x2x256xf32, #tpu.memory_space<vmem>>, vector<8x2x256xf32>,
    %c0_9 = arith.constant 0 : index
    %c0_10 = arith.constant 0 : index
    %9 = vector.load %arg2[%c0_9, %c0_10] : memref<32x128xf32, #tpu.memory_space<vmem>>, vector<32x128xf32>
    %c0_11 = arith.constant 0 : index
    %c0_12 = arith.constant 0 : index
    %10 = vector.load %arg3[%c0_11, %c0_12] : memref<32x128xf32, #tpu.memory_space<vmem>>, vector<32x128xf32>
    %cst_13 = arith.constant 0.000000e+00 : f32
    %11 = vector.broadcast %cst_13 : f32 to vector<2x32xf32>
    %c0_i32 = arith.constant 0 : i32
    %c7_i32 = arith.constant 7 : i32
    %12 = arith.subi %c7_i32, %c0_i32 : i32
    %13 = arith.index_cast %c0_i32 : i32 to index
    %c0_14 = arith.constant 0 : index
    %c0_15 = arith.constant 0 : index
    %14 = vector.load %arg6[%13, %c0_14, %c0_15] : memref<8x2x256xf32, #tpu.memory_space<vmem>>, vector<1x2x128xf32>
    %15 = vector.shape_cast %14 : vector<1x2x128xf32> to vector<2x128xf32>
    %cst_16 = arith.constant dense<0.000000e+00> : vector<2x128xf32>
    %16 = tpu.matmul %11, %9, %cst_16 {dimension_numbers = #tpu.dot_dimension_numbers<[1], [0], [0], [1], [0, 0, 1, 1], [], []>} : vector<2x32xf32>, vector<32x128xf32>, vector<2x128xf32> -> vector<2x128xf32>
    %17 = arith.addf %15, %16 : vector<2x128xf32>
    %18 = arith.index_cast %12 : i32 to index
    %c0_17 = arith.constant 0 : index
    %c128 = arith.constant 128 : index
    %19 = vector.load %arg6[%18, %c0_17, %c128] : memref<8x2x256xf32, #tpu.memory_space<vmem>>, vector<1x2x128xf32>
    %20 = vector.shape_cast %19 : vector<1x2x128xf32> to vector<2x128xf32>
    %cst_18 = arith.constant dense<0.000000e+00> : vector<2x128xf32>
    %21 = tpu.matmul %11, %10, %cst_18 {dimension_numbers = #tpu.dot_dimension_numbers<[1], [0], [0], [1], [0, 0, 1, 1], [], []>} : vector<2x32xf32>, vector<32x128xf32>, vector<2x128xf32> -> vector<2x128xf32>
    %22 = arith.addf %20, %21 : vector<2x128xf32>
    %23 = vector.extract_strided_slice %17 {offsets = [0, 0], sizes = [2, 32], strides = [1, 1]} : vector<2x128xf32> to vector<2x32xf32>
    %24 = arith.negf %23 : vector<2x32xf32>
    %25 = math.exp %24 : vector<2x32xf32>
    %cst_19 = arith.constant 1.000000e+00 : f32
    %26 = vector.broadcast %cst_19 : f32 to vector<2x32xf32>
    %27 = arith.addf %26, %25 : vector<2x32xf32>
    %28 = arith.divf %26, %27 : vector<2x32xf32>
    %29 = vector.extract_strided_slice %17 {offsets = [0, 32], sizes = [2, 32], strides = [1, 1]} : vector<2x128xf32> to vector<2x32xf32>
    %30 = arith.negf %29 : vector<2x32xf32>
    %31 = math.exp %30 : vector<2x32xf32>
    %cst_20 = arith.constant 1.000000e+00 : f32
    %32 = vector.broadcast %cst_20 : f32 to vector<2x32xf32>
    %33 = arith.addf %32, %31 : vector<2x32xf32>
    %34 = arith.divf %32, %33 : vector<2x32xf32>
    %35 = vector.extract_strided_slice %17 {offsets = [0, 64], sizes = [2, 32], strides = [1, 1]} : vector<2x128xf32> to vector<2x32xf32>
    %36 = math.tanh %35 : vector<2x32xf32>
    %37 = vector.extract_strided_slice %17 {offsets = [0, 96], sizes = [2, 32], strides = [1, 1]} : vector<2x128xf32> to vector<2x32xf32>
    %38 = arith.negf %37 : vector<2x32xf32>
    %39 = math.exp %38 : vector<2x32xf32>
    %cst_21 = arith.constant 1.000000e+00 : f32
    %40 = vector.broadcast %cst_21 : f32 to vector<2x32xf32>
    %41 = arith.addf %40, %39 : vector<2x32xf32>
    %42 = arith.divf %40, %41 : vector<2x32xf32>
    %43 = arith.mulf %34, %11 : vector<2x32xf32>
    %44 = arith.mulf %28, %36 : vector<2x32xf32>
    %45 = arith.addf %43, %44 : vector<2x32xf32>
    %46 = math.tanh %45 : vector<2x32xf32>
    %47 = arith.mulf %42, %46 : vector<2x32xf32>
    %48 = vector.extract_strided_slice %22 {offsets = [0, 0], sizes = [2, 32], strides = [1, 1]} : vector<2x128xf32> to vector<2x32xf32>
    %49 = arith.negf %48 : vector<2x32xf32>
    %50 = math.exp %49 : vector<2x32xf32>
    %cst_22 = arith.constant 1.000000e+00 : f32
    %51 = vector.broadcast %cst_22 : f32 to vector<2x32xf32>
    %52 = arith.addf %51, %50 : vector<2x32xf32>
    %53 = arith.divf %51, %52 : vector<2x32xf32>
    %54 = vector.extract_strided_slice %22 {offsets = [0, 32], sizes = [2, 32], strides = [1, 1]} : vector<2x128xf32> to vector<2x32xf32>
    %55 = arith.negf %54 : vector<2x32xf32>
    %56 = math.exp %55 : vector<2x32xf32>
    %cst_23 = arith.constant 1.000000e+00 : f32
    %57 = vector.broadcast %cst_23 : f32 to vector<2x32xf32>
    %58 = arith.addf %57, %56 : vector<2x32xf32>
    %59 = arith.divf %57, %58 : vector<2x32xf32>
    %60 = vector.extract_strided_slice %22 {offsets = [0, 64], sizes = [2, 32], strides = [1, 1]} : vector<2x128xf32> to vector<2x32xf32>
    %61 = math.tanh %60 : vector<2x32xf32>
    %62 = vector.extract_strided_slice %22 {offsets = [0, 96], sizes = [2, 32], strides = [1, 1]} : vector<2x128xf32> to vector<2x32xf32>
    %63 = arith.negf %62 : vector<2x32xf32>
    %64 = math.exp %63 : vector<2x32xf32>
    %cst_24 = arith.constant 1.000000e+00 : f32
    %65 = vector.broadcast %cst_24 : f32 to vector<2x32xf32>
    %66 = arith.addf %65, %64 : vector<2x32xf32>
    %67 = arith.divf %65, %66 : vector<2x32xf32>
    %68 = arith.mulf %59, %11 : vector<2x32xf32>
    %69 = arith.mulf %53, %61 : vector<2x32xf32>
    %70 = arith.addf %68, %69 : vector<2x32xf32>
    %71 = math.tanh %70 : vector<2x32xf32>
    %72 = arith.mulf %67, %71 : vector<2x32xf32>
    %73 = arith.index_cast %c0_i32 : i32 to index
    %c0_25 = arith.constant 0 : index
    %c0_26 = arith.constant 0 : index
    %74 = vector.load %arg5[%73, %c0_25, %c0_26] : memref<8x2x64xf32, #tpu.memory_space<vmem>>, vector<1x2x32xf32>
    %75 = vector.shape_cast %74 : vector<1x2x32xf32> to vector<2x32xf32>
    %76 = vector.shape_cast %47 : vector<2x32xf32> to vector<1x2x32xf32>
    tpu.vector_store %arg5[%73, %c0_25, %c0_26], %76 {strides = array<i32>} : memref<8x2x64xf32, #tpu.memory_space<vmem>>, vector<1x2x32xf32>,
    %77 = arith.index_cast %12 : i32 to index
    %c0_27 = arith.constant 0 : index
    %c32 = arith.constant 32 : index
    %78 = vector.load %arg5[%77, %c0_27, %c32] : memref<8x2x64xf32, #tpu.memory_space<vmem>>, vector<1x2x32xf32>
    %79 = vector.shape_cast %78 : vector<1x2x32xf32> to vector<2x32xf32>
    %80 = vector.shape_cast %72 : vector<2x32xf32> to vector<1x2x32xf32>
    tpu.vector_store %arg5[%77, %c0_27, %c32], %80 {strides = array<i32>} : memref<8x2x64xf32, #tpu.memory_space<vmem>>, vector<1x2x32xf32>,
    %c1_i32 = arith.constant 1 : i32
    %c7_i32_28 = arith.constant 7 : i32
    %81 = arith.subi %c7_i32_28, %c1_i32 : i32
    %82 = arith.index_cast %c1_i32 : i32 to index
    %c0_29 = arith.constant 0 : index
    %c0_30 = arith.constant 0 : index
    %83 = vector.load %arg6[%82, %c0_29, %c0_30] : memref<8x2x256xf32, #tpu.memory_space<vmem>>, vector<1x2x128xf32>
    %84 = vector.shape_cast %83 : vector<1x2x128xf32> to vector<2x128xf32>
    %cst_31 = arith.constant dense<0.000000e+00> : vector<2x128xf32>
    %85 = tpu.matmul %47, %9, %cst_31 {dimension_numbers = #tpu.dot_dimension_numbers<[1], [0], [0], [1], [0, 0, 1, 1], [], []>} : vector<2x32xf32>, vector<32x128xf32>, vector<2x128xf32> -> vector<2x128xf32>
    %86 = arith.addf %84, %85 : vector<2x128xf32>
    %87 = arith.index_cast %81 : i32 to index
    %c0_32 = arith.constant 0 : index
    %c128_33 = arith.constant 128 : index
    %88 = vector.load %arg6[%87, %c0_32, %c128_33] : memref<8x2x256xf32, #tpu.memory_space<vmem>>, vector<1x2x128xf32>
    %89 = vector.shape_cast %88 : vector<1x2x128xf32> to vector<2x128xf32>
    %cst_34 = arith.constant dense<0.000000e+00> : vector<2x128xf32>
    %90 = tpu.matmul %72, %10, %cst_34 {dimension_numbers = #tpu.dot_dimension_numbers<[1], [0], [0], [1], [0, 0, 1, 1], [], []>} : vector<2x32xf32>, vector<32x128xf32>, vector<2x128xf32> -> vector<2x128xf32>
    %91 = arith.addf %89, %90 : vector<2x128xf32>
    %92 = vector.extract_strided_slice %86 {offsets = [0, 0], sizes = [2, 32], strides = [1, 1]} : vector<2x128xf32> to vector<2x32xf32>
    %93 = arith.negf %92 : vector<2x32xf32>
    %94 = math.exp %93 : vector<2x32xf32>
    %cst_35 = arith.constant 1.000000e+00 : f32
    %95 = vector.broadcast %cst_35 : f32 to vector<2x32xf32>
    %96 = arith.addf %95, %94 : vector<2x32xf32>
    %97 = arith.divf %95, %96 : vector<2x32xf32>
    %98 = vector.extract_strided_slice %86 {offsets = [0, 32], sizes = [2, 32], strides = [1, 1]} : vector<2x128xf32> to vector<2x32xf32>
    %99 = arith.negf %98 : vector<2x32xf32>
    %100 = math.exp %99 : vector<2x32xf32>
    %cst_36 = arith.constant 1.000000e+00 : f32
    %101 = vector.broadcast %cst_36 : f32 to vector<2x32xf32>
    %102 = arith.addf %101, %100 : vector<2x32xf32>
    %103 = arith.divf %101, %102 : vector<2x32xf32>
    %104 = vector.extract_strided_slice %86 {offsets = [0, 64], sizes = [2, 32], strides = [1, 1]} : vector<2x128xf32> to vector<2x32xf32>
    %105 = math.tanh %104 : vector<2x32xf32>
    %106 = vector.extract_strided_slice %86 {offsets = [0, 96], sizes = [2, 32], strides = [1, 1]} : vector<2x128xf32> to vector<2x32xf32>
    %107 = arith.negf %106 : vector<2x32xf32>
    %108 = math.exp %107 : vector<2x32xf32>
    %cst_37 = arith.constant 1.000000e+00 : f32
    %109 = vector.broadcast %cst_37 : f32 to vector<2x32xf32>
    %110 = arith.addf %109, %108 : vector<2x32xf32>
    %111 = arith.divf %109, %110 : vector<2x32xf32>
    %112 = arith.mulf %103, %45 : vector<2x32xf32>
    %113 = arith.mulf %97, %105 : vector<2x32xf32>
    %114 = arith.addf %112, %113 : vector<2x32xf32>
    %115 = math.tanh %114 : vector<2x32xf32>
    %116 = arith.mulf %111, %115 : vector<2x32xf32>
    %117 = vector.extract_strided_slice %91 {offsets = [0, 0], sizes = [2, 32], strides = [1, 1]} : vector<2x128xf32> to vector<2x32xf32>
    %118 = arith.negf %117 : vector<2x32xf32>
    %119 = math.exp %118 : vector<2x32xf32>
    %cst_38 = arith.constant 1.000000e+00 : f32
    %120 = vector.broadcast %cst_38 : f32 to vector<2x32xf32>
    %121 = arith.addf %120, %119 : vector<2x32xf32>
    %122 = arith.divf %120, %121 : vector<2x32xf32>
    %123 = vector.extract_strided_slice %91 {offsets = [0, 32], sizes = [2, 32], strides = [1, 1]} : vector<2x128xf32> to vector<2x32xf32>
    %124 = arith.negf %123 : vector<2x32xf32>
    %125 = math.exp %124 : vector<2x32xf32>
    %cst_39 = arith.constant 1.000000e+00 : f32
    %126 = vector.broadcast %cst_39 : f32 to vector<2x32xf32>
    %127 = arith.addf %126, %125 : vector<2x32xf32>
    %128 = arith.divf %126, %127 : vector<2x32xf32>
    %129 = vector.extract_strided_slice %91 {offsets = [0, 64], sizes = [2, 32], strides = [1, 1]} : vector<2x128xf32> to vector<2x32xf32>
    %130 = math.tanh %129 : vector<2x32xf32>
    %131 = vector.extract_strided_slice %91 {offsets = [0, 96], sizes = [2, 32], strides = [1, 1]} : vector<2x128xf32> to vector<2x32xf32>
    %132 = arith.negf %131 : vector<2x32xf32>
    %133 = math.exp %132 : vector<2x32xf32>
    %cst_40 = arith.constant 1.000000e+00 : f32
    %134 = vector.broadcast %cst_40 : f32 to vector<2x32xf32>
    %135 = arith.addf %134, %133 : vector<2x32xf32>
    %136 = arith.divf %134, %135 : vector<2x32xf32>
    %137 = arith.mulf %128, %70 : vector<2x32xf32>
    %138 = arith.mulf %122, %130 : vector<2x32xf32>
    %139 = arith.addf %137, %138 : vector<2x32xf32>
    %140 = math.tanh %139 : vector<2x32xf32>
    %141 = arith.mulf %136, %140 : vector<2x32xf32>
    %142 = arith.index_cast %c1_i32 : i32 to index
    %c0_41 = arith.constant 0 : index
    %c0_42 = arith.constant 0 : index
    %143 = vector.load %arg5[%142, %c0_41, %c0_42] : memref<8x2x64xf32, #tpu.memory_space<vmem>>, vector<1x2x32xf32>
    %144 = vector.shape_cast %143 : vector<1x2x32xf32> to vector<2x32xf32>
    %145 = vector.shape_cast %116 : vector<2x32xf32> to vector<1x2x32xf32>
    tpu.vector_store %arg5[%142, %c0_41, %c0_42], %145 {strides = array<i32>} : memref<8x2x64xf32, #tpu.memory_space<vmem>>, vector<1x2x32xf32>,
    %146 = arith.index_cast %81 : i32 to index
    %c0_43 = arith.constant 0 : index
    %c32_44 = arith.constant 32 : index
    %147 = vector.load %arg5[%146, %c0_43, %c32_44] : memref<8x2x64xf32, #tpu.memory_space<vmem>>, vector<1x2x32xf32>
    %148 = vector.shape_cast %147 : vector<1x2x32xf32> to vector<2x32xf32>
    %149 = vector.shape_cast %141 : vector<2x32xf32> to vector<1x2x32xf32>
    tpu.vector_store %arg5[%146, %c0_43, %c32_44], %149 {strides = array<i32>} : memref<8x2x64xf32, #tpu.memory_space<vmem>>, vector<1x2x32xf32>,
    %c2_i32 = arith.constant 2 : i32
    %c7_i32_45 = arith.constant 7 : i32
    %150 = arith.subi %c7_i32_45, %c2_i32 : i32
    %151 = arith.index_cast %c2_i32 : i32 to index
    %c0_46 = arith.constant 0 : index
    %c0_47 = arith.constant 0 : index
    %152 = vector.load %arg6[%151, %c0_46, %c0_47] : memref<8x2x256xf32, #tpu.memory_space<vmem>>, vector<1x2x128xf32>
    %153 = vector.shape_cast %152 : vector<1x2x128xf32> to vector<2x128xf32>
    %cst_48 = arith.constant dense<0.000000e+00> : vector<2x128xf32>
    %154 = tpu.matmul %116, %9, %cst_48 {dimension_numbers = #tpu.dot_dimension_numbers<[1], [0], [0], [1], [0, 0, 1, 1], [], []>} : vector<2x32xf32>, vector<32x128xf32>, vector<2x128xf32> -> vector<2x128xf32>
    %155 = arith.addf %153, %154 : vector<2x128xf32>
    %156 = arith.index_cast %150 : i32 to index
    %c0_49 = arith.constant 0 : index
    %c128_50 = arith.constant 128 : index
    %157 = vector.load %arg6[%156, %c0_49, %c128_50] : memref<8x2x256xf32, #tpu.memory_space<vmem>>, vector<1x2x128xf32>
    %158 = vector.shape_cast %157 : vector<1x2x128xf32> to vector<2x128xf32>
    %cst_51 = arith.constant dense<0.000000e+00> : vector<2x128xf32>
    %159 = tpu.matmul %141, %10, %cst_51 {dimension_numbers = #tpu.dot_dimension_numbers<[1], [0], [0], [1], [0, 0, 1, 1], [], []>} : vector<2x32xf32>, vector<32x128xf32>, vector<2x128xf32> -> vector<2x128xf32>
    %160 = arith.addf %158, %159 : vector<2x128xf32>
    %161 = vector.extract_strided_slice %155 {offsets = [0, 0], sizes = [2, 32], strides = [1, 1]} : vector<2x128xf32> to vector<2x32xf32>
    %162 = arith.negf %161 : vector<2x32xf32>
    %163 = math.exp %162 : vector<2x32xf32>
    %cst_52 = arith.constant 1.000000e+00 : f32
    %164 = vector.broadcast %cst_52 : f32 to vector<2x32xf32>
    %165 = arith.addf %164, %163 : vector<2x32xf32>
    %166 = arith.divf %164, %165 : vector<2x32xf32>
    %167 = vector.extract_strided_slice %155 {offsets = [0, 32], sizes = [2, 32], strides = [1, 1]} : vector<2x128xf32> to vector<2x32xf32>
    %168 = arith.negf %167 : vector<2x32xf32>
    %169 = math.exp %168 : vector<2x32xf32>
    %cst_53 = arith.constant 1.000000e+00 : f32
    %170 = vector.broadcast %cst_53 : f32 to vector<2x32xf32>
    %171 = arith.addf %170, %169 : vector<2x32xf32>
    %172 = arith.divf %170, %171 : vector<2x32xf32>
    %173 = vector.extract_strided_slice %155 {offsets = [0, 64], sizes = [2, 32], strides = [1, 1]} : vector<2x128xf32> to vector<2x32xf32>
    %174 = math.tanh %173 : vector<2x32xf32>
    %175 = vector.extract_strided_slice %155 {offsets = [0, 96], sizes = [2, 32], strides = [1, 1]} : vector<2x128xf32> to vector<2x32xf32>
    %176 = arith.negf %175 : vector<2x32xf32>
    %177 = math.exp %176 : vector<2x32xf32>
    %cst_54 = arith.constant 1.000000e+00 : f32
    %178 = vector.broadcast %cst_54 : f32 to vector<2x32xf32>
    %179 = arith.addf %178, %177 : vector<2x32xf32>
    %180 = arith.divf %178, %179 : vector<2x32xf32>
    %181 = arith.mulf %172, %114 : vector<2x32xf32>
    %182 = arith.mulf %166, %174 : vector<2x32xf32>
    %183 = arith.addf %181, %182 : vector<2x32xf32>
    %184 = math.tanh %183 : vector<2x32xf32>
    %185 = arith.mulf %180, %184 : vector<2x32xf32>
    %186 = vector.extract_strided_slice %160 {offsets = [0, 0], sizes = [2, 32], strides = [1, 1]} : vector<2x128xf32> to vector<2x32xf32>
    %187 = arith.negf %186 : vector<2x32xf32>
    %188 = math.exp %187 : vector<2x32xf32>
    %cst_55 = arith.constant 1.000000e+00 : f32
    %189 = vector.broadcast %cst_55 : f32 to vector<2x32xf32>
    %190 = arith.addf %189, %188 : vector<2x32xf32>
    %191 = arith.divf %189, %190 : vector<2x32xf32>
    %192 = vector.extract_strided_slice %160 {offsets = [0, 32], sizes = [2, 32], strides = [1, 1]} : vector<2x128xf32> to vector<2x32xf32>
    %193 = arith.negf %192 : vector<2x32xf32>
    %194 = math.exp %193 : vector<2x32xf32>
    %cst_56 = arith.constant 1.000000e+00 : f32
    %195 = vector.broadcast %cst_56 : f32 to vector<2x32xf32>
    %196 = arith.addf %195, %194 : vector<2x32xf32>
    %197 = arith.divf %195, %196 : vector<2x32xf32>
    %198 = vector.extract_strided_slice %160 {offsets = [0, 64], sizes = [2, 32], strides = [1, 1]} : vector<2x128xf32> to vector<2x32xf32>
    %199 = math.tanh %198 : vector<2x32xf32>
    %200 = vector.extract_strided_slice %160 {offsets = [0, 96], sizes = [2, 32], strides = [1, 1]} : vector<2x128xf32> to vector<2x32xf32>
    %201 = arith.negf %200 : vector<2x32xf32>
    %202 = math.exp %201 : vector<2x32xf32>
    %cst_57 = arith.constant 1.000000e+00 : f32
    %203 = vector.broadcast %cst_57 : f32 to vector<2x32xf32>
    %204 = arith.addf %203, %202 : vector<2x32xf32>
    %205 = arith.divf %203, %204 : vector<2x32xf32>
    %206 = arith.mulf %197, %139 : vector<2x32xf32>
    %207 = arith.mulf %191, %199 : vector<2x32xf32>
    %208 = arith.addf %206, %207 : vector<2x32xf32>
    %209 = math.tanh %208 : vector<2x32xf32>
    %210 = arith.mulf %205, %209 : vector<2x32xf32>
    %211 = arith.index_cast %c2_i32 : i32 to index
    %c0_58 = arith.constant 0 : index
    %c0_59 = arith.constant 0 : index
    %212 = vector.load %arg5[%211, %c0_58, %c0_59] : memref<8x2x64xf32, #tpu.memory_space<vmem>>, vector<1x2x32xf32>
    %213 = vector.shape_cast %212 : vector<1x2x32xf32> to vector<2x32xf32>
    %214 = vector.shape_cast %185 : vector<2x32xf32> to vector<1x2x32xf32>
    tpu.vector_store %arg5[%211, %c0_58, %c0_59], %214 {strides = array<i32>} : memref<8x2x64xf32, #tpu.memory_space<vmem>>, vector<1x2x32xf32>,
    %215 = arith.index_cast %150 : i32 to index
    %c0_60 = arith.constant 0 : index
    %c32_61 = arith.constant 32 : index
    %216 = vector.load %arg5[%215, %c0_60, %c32_61] : memref<8x2x64xf32, #tpu.memory_space<vmem>>, vector<1x2x32xf32>
    %217 = vector.shape_cast %216 : vector<1x2x32xf32> to vector<2x32xf32>
    %218 = vector.shape_cast %210 : vector<2x32xf32> to vector<1x2x32xf32>
    tpu.vector_store %arg5[%215, %c0_60, %c32_61], %218 {strides = array<i32>} : memref<8x2x64xf32, #tpu.memory_space<vmem>>, vector<1x2x32xf32>,
    %c3_i32 = arith.constant 3 : i32
    %c7_i32_62 = arith.constant 7 : i32
    %219 = arith.subi %c7_i32_62, %c3_i32 : i32
    %220 = arith.index_cast %c3_i32 : i32 to index
    %c0_63 = arith.constant 0 : index
    %c0_64 = arith.constant 0 : index
    %221 = vector.load %arg6[%220, %c0_63, %c0_64] : memref<8x2x256xf32, #tpu.memory_space<vmem>>, vector<1x2x128xf32>
    %222 = vector.shape_cast %221 : vector<1x2x128xf32> to vector<2x128xf32>
    %cst_65 = arith.constant dense<0.000000e+00> : vector<2x128xf32>
    %223 = tpu.matmul %185, %9, %cst_65 {dimension_numbers = #tpu.dot_dimension_numbers<[1], [0], [0], [1], [0, 0, 1, 1], [], []>} : vector<2x32xf32>, vector<32x128xf32>, vector<2x128xf32> -> vector<2x128xf32>
    %224 = arith.addf %222, %223 : vector<2x128xf32>
    %225 = arith.index_cast %219 : i32 to index
    %c0_66 = arith.constant 0 : index
    %c128_67 = arith.constant 128 : index
    %226 = vector.load %arg6[%225, %c0_66, %c128_67] : memref<8x2x256xf32, #tpu.memory_space<vmem>>, vector<1x2x128xf32>
    %227 = vector.shape_cast %226 : vector<1x2x128xf32> to vector<2x128xf32>
    %cst_68 = arith.constant dense<0.000000e+00> : vector<2x128xf32>
    %228 = tpu.matmul %210, %10, %cst_68 {dimension_numbers = #tpu.dot_dimension_numbers<[1], [0], [0], [1], [0, 0, 1, 1], [], []>} : vector<2x32xf32>, vector<32x128xf32>, vector<2x128xf32> -> vector<2x128xf32>
    %229 = arith.addf %227, %228 : vector<2x128xf32>
    %230 = vector.extract_strided_slice %224 {offsets = [0, 0], sizes = [2, 32], strides = [1, 1]} : vector<2x128xf32> to vector<2x32xf32>
    %231 = arith.negf %230 : vector<2x32xf32>
    %232 = math.exp %231 : vector<2x32xf32>
    %cst_69 = arith.constant 1.000000e+00 : f32
    %233 = vector.broadcast %cst_69 : f32 to vector<2x32xf32>
    %234 = arith.addf %233, %232 : vector<2x32xf32>
    %235 = arith.divf %233, %234 : vector<2x32xf32>
    %236 = vector.extract_strided_slice %224 {offsets = [0, 32], sizes = [2, 32], strides = [1, 1]} : vector<2x128xf32> to vector<2x32xf32>
    %237 = arith.negf %236 : vector<2x32xf32>
    %238 = math.exp %237 : vector<2x32xf32>
    %cst_70 = arith.constant 1.000000e+00 : f32
    %239 = vector.broadcast %cst_70 : f32 to vector<2x32xf32>
    %240 = arith.addf %239, %238 : vector<2x32xf32>
    %241 = arith.divf %239, %240 : vector<2x32xf32>
    %242 = vector.extract_strided_slice %224 {offsets = [0, 64], sizes = [2, 32], strides = [1, 1]} : vector<2x128xf32> to vector<2x32xf32>
    %243 = math.tanh %242 : vector<2x32xf32>
    %244 = vector.extract_strided_slice %224 {offsets = [0, 96], sizes = [2, 32], strides = [1, 1]} : vector<2x128xf32> to vector<2x32xf32>
    %245 = arith.negf %244 : vector<2x32xf32>
    %246 = math.exp %245 : vector<2x32xf32>
    %cst_71 = arith.constant 1.000000e+00 : f32
    %247 = vector.broadcast %cst_71 : f32 to vector<2x32xf32>
    %248 = arith.addf %247, %246 : vector<2x32xf32>
    %249 = arith.divf %247, %248 : vector<2x32xf32>
    %250 = arith.mulf %241, %183 : vector<2x32xf32>
    %251 = arith.mulf %235, %243 : vector<2x32xf32>
    %252 = arith.addf %250, %251 : vector<2x32xf32>
    %253 = math.tanh %252 : vector<2x32xf32>
    %254 = arith.mulf %249, %253 : vector<2x32xf32>
    %255 = vector.extract_strided_slice %229 {offsets = [0, 0], sizes = [2, 32], strides = [1, 1]} : vector<2x128xf32> to vector<2x32xf32>
    %256 = arith.negf %255 : vector<2x32xf32>
    %257 = math.exp %256 : vector<2x32xf32>
    %cst_72 = arith.constant 1.000000e+00 : f32
    %258 = vector.broadcast %cst_72 : f32 to vector<2x32xf32>
    %259 = arith.addf %258, %257 : vector<2x32xf32>
    %260 = arith.divf %258, %259 : vector<2x32xf32>
    %261 = vector.extract_strided_slice %229 {offsets = [0, 32], sizes = [2, 32], strides = [1, 1]} : vector<2x128xf32> to vector<2x32xf32>
    %262 = arith.negf %261 : vector<2x32xf32>
    %263 = math.exp %262 : vector<2x32xf32>
    %cst_73 = arith.constant 1.000000e+00 : f32
    %264 = vector.broadcast %cst_73 : f32 to vector<2x32xf32>
    %265 = arith.addf %264, %263 : vector<2x32xf32>
    %266 = arith.divf %264, %265 : vector<2x32xf32>
    %267 = vector.extract_strided_slice %229 {offsets = [0, 64], sizes = [2, 32], strides = [1, 1]} : vector<2x128xf32> to vector<2x32xf32>
    %268 = math.tanh %267 : vector<2x32xf32>
    %269 = vector.extract_strided_slice %229 {offsets = [0, 96], sizes = [2, 32], strides = [1, 1]} : vector<2x128xf32> to vector<2x32xf32>
    %270 = arith.negf %269 : vector<2x32xf32>
    %271 = math.exp %270 : vector<2x32xf32>
    %cst_74 = arith.constant 1.000000e+00 : f32
    %272 = vector.broadcast %cst_74 : f32 to vector<2x32xf32>
    %273 = arith.addf %272, %271 : vector<2x32xf32>
    %274 = arith.divf %272, %273 : vector<2x32xf32>
    %275 = arith.mulf %266, %208 : vector<2x32xf32>
    %276 = arith.mulf %260, %268 : vector<2x32xf32>
    %277 = arith.addf %275, %276 : vector<2x32xf32>
    %278 = math.tanh %277 : vector<2x32xf32>
    %279 = arith.mulf %274, %278 : vector<2x32xf32>
    %280 = arith.index_cast %c3_i32 : i32 to index
    %c0_75 = arith.constant 0 : index
    %c0_76 = arith.constant 0 : index
    %281 = vector.load %arg5[%280, %c0_75, %c0_76] : memref<8x2x64xf32, #tpu.memory_space<vmem>>, vector<1x2x32xf32>
    %282 = vector.shape_cast %281 : vector<1x2x32xf32> to vector<2x32xf32>
    %283 = vector.shape_cast %254 : vector<2x32xf32> to vector<1x2x32xf32>
    tpu.vector_store %arg5[%280, %c0_75, %c0_76], %283 {strides = array<i32>} : memref<8x2x64xf32, #tpu.memory_space<vmem>>, vector<1x2x32xf32>,
    %284 = arith.index_cast %219 : i32 to index
    %c0_77 = arith.constant 0 : index
    %c32_78 = arith.constant 32 : index
    %285 = vector.load %arg5[%284, %c0_77, %c32_78] : memref<8x2x64xf32, #tpu.memory_space<vmem>>, vector<1x2x32xf32>
    %286 = vector.shape_cast %285 : vector<1x2x32xf32> to vector<2x32xf32>
    %287 = vector.shape_cast %279 : vector<2x32xf32> to vector<1x2x32xf32>
    tpu.vector_store %arg5[%284, %c0_77, %c32_78], %287 {strides = array<i32>} : memref<8x2x64xf32, #tpu.memory_space<vmem>>, vector<1x2x32xf32>,
    %c4_i32 = arith.constant 4 : i32
    %c7_i32_79 = arith.constant 7 : i32
    %288 = arith.subi %c7_i32_79, %c4_i32 : i32
    %289 = arith.index_cast %c4_i32 : i32 to index
    %c0_80 = arith.constant 0 : index
    %c0_81 = arith.constant 0 : index
    %290 = vector.load %arg6[%289, %c0_80, %c0_81] : memref<8x2x256xf32, #tpu.memory_space<vmem>>, vector<1x2x128xf32>
    %291 = vector.shape_cast %290 : vector<1x2x128xf32> to vector<2x128xf32>
    %cst_82 = arith.constant dense<0.000000e+00> : vector<2x128xf32>
    %292 = tpu.matmul %254, %9, %cst_82 {dimension_numbers = #tpu.dot_dimension_numbers<[1], [0], [0], [1], [0, 0, 1, 1], [], []>} : vector<2x32xf32>, vector<32x128xf32>, vector<2x128xf32> -> vector<2x128xf32>
    %293 = arith.addf %291, %292 : vector<2x128xf32>
    %294 = arith.index_cast %288 : i32 to index
    %c0_83 = arith.constant 0 : index
    %c128_84 = arith.constant 128 : index
    %295 = vector.load %arg6[%294, %c0_83, %c128_84] : memref<8x2x256xf32, #tpu.memory_space<vmem>>, vector<1x2x128xf32>
    %296 = vector.shape_cast %295 : vector<1x2x128xf32> to vector<2x128xf32>
    %cst_85 = arith.constant dense<0.000000e+00> : vector<2x128xf32>
    %297 = tpu.matmul %279, %10, %cst_85 {dimension_numbers = #tpu.dot_dimension_numbers<[1], [0], [0], [1], [0, 0, 1, 1], [], []>} : vector<2x32xf32>, vector<32x128xf32>, vector<2x128xf32> -> vector<2x128xf32>
    %298 = arith.addf %296, %297 : vector<2x128xf32>
    %299 = vector.extract_strided_slice %293 {offsets = [0, 0], sizes = [2, 32], strides = [1, 1]} : vector<2x128xf32> to vector<2x32xf32>
    %300 = arith.negf %299 : vector<2x32xf32>
    %301 = math.exp %300 : vector<2x32xf32>
    %cst_86 = arith.constant 1.000000e+00 : f32
    %302 = vector.broadcast %cst_86 : f32 to vector<2x32xf32>
    %303 = arith.addf %302, %301 : vector<2x32xf32>
    %304 = arith.divf %302, %303 : vector<2x32xf32>
    %305 = vector.extract_strided_slice %293 {offsets = [0, 32], sizes = [2, 32], strides = [1, 1]} : vector<2x128xf32> to vector<2x32xf32>
    %306 = arith.negf %305 : vector<2x32xf32>
    %307 = math.exp %306 : vector<2x32xf32>
    %cst_87 = arith.constant 1.000000e+00 : f32
    %308 = vector.broadcast %cst_87 : f32 to vector<2x32xf32>
    %309 = arith.addf %308, %307 : vector<2x32xf32>
    %310 = arith.divf %308, %309 : vector<2x32xf32>
    %311 = vector.extract_strided_slice %293 {offsets = [0, 64], sizes = [2, 32], strides = [1, 1]} : vector<2x128xf32> to vector<2x32xf32>
    %312 = math.tanh %311 : vector<2x32xf32>
    %313 = vector.extract_strided_slice %293 {offsets = [0, 96], sizes = [2, 32], strides = [1, 1]} : vector<2x128xf32> to vector<2x32xf32>
    %314 = arith.negf %313 : vector<2x32xf32>
    %315 = math.exp %314 : vector<2x32xf32>
    %cst_88 = arith.constant 1.000000e+00 : f32
    %316 = vector.broadcast %cst_88 : f32 to vector<2x32xf32>
    %317 = arith.addf %316, %315 : vector<2x32xf32>
    %318 = arith.divf %316, %317 : vector<2x32xf32>
    %319 = arith.mulf %310, %252 : vector<2x32xf32>
    %320 = arith.mulf %304, %312 : vector<2x32xf32>
    %321 = arith.addf %319, %320 : vector<2x32xf32>
    %322 = math.tanh %321 : vector<2x32xf32>
    %323 = arith.mulf %318, %322 : vector<2x32xf32>
    %324 = vector.extract_strided_slice %298 {offsets = [0, 0], sizes = [2, 32], strides = [1, 1]} : vector<2x128xf32> to vector<2x32xf32>
    %325 = arith.negf %324 : vector<2x32xf32>
    %326 = math.exp %325 : vector<2x32xf32>
    %cst_89 = arith.constant 1.000000e+00 : f32
    %327 = vector.broadcast %cst_89 : f32 to vector<2x32xf32>
    %328 = arith.addf %327, %326 : vector<2x32xf32>
    %329 = arith.divf %327, %328 : vector<2x32xf32>
    %330 = vector.extract_strided_slice %298 {offsets = [0, 32], sizes = [2, 32], strides = [1, 1]} : vector<2x128xf32> to vector<2x32xf32>
    %331 = arith.negf %330 : vector<2x32xf32>
    %332 = math.exp %331 : vector<2x32xf32>
    %cst_90 = arith.constant 1.000000e+00 : f32
    %333 = vector.broadcast %cst_90 : f32 to vector<2x32xf32>
    %334 = arith.addf %333, %332 : vector<2x32xf32>
    %335 = arith.divf %333, %334 : vector<2x32xf32>
    %336 = vector.extract_strided_slice %298 {offsets = [0, 64], sizes = [2, 32], strides = [1, 1]} : vector<2x128xf32> to vector<2x32xf32>
    %337 = math.tanh %336 : vector<2x32xf32>
    %338 = vector.extract_strided_slice %298 {offsets = [0, 96], sizes = [2, 32], strides = [1, 1]} : vector<2x128xf32> to vector<2x32xf32>
    %339 = arith.negf %338 : vector<2x32xf32>
    %340 = math.exp %339 : vector<2x32xf32>
    %cst_91 = arith.constant 1.000000e+00 : f32
    %341 = vector.broadcast %cst_91 : f32 to vector<2x32xf32>
    %342 = arith.addf %341, %340 : vector<2x32xf32>
    %343 = arith.divf %341, %342 : vector<2x32xf32>
    %344 = arith.mulf %335, %277 : vector<2x32xf32>
    %345 = arith.mulf %329, %337 : vector<2x32xf32>
    %346 = arith.addf %344, %345 : vector<2x32xf32>
    %347 = math.tanh %346 : vector<2x32xf32>
    %348 = arith.mulf %343, %347 : vector<2x32xf32>
    %349 = arith.index_cast %c4_i32 : i32 to index
    %c0_92 = arith.constant 0 : index
    %c0_93 = arith.constant 0 : index
    %350 = vector.load %arg5[%349, %c0_92, %c0_93] : memref<8x2x64xf32, #tpu.memory_space<vmem>>, vector<1x2x32xf32>
    %351 = vector.shape_cast %350 : vector<1x2x32xf32> to vector<2x32xf32>
    %352 = vector.shape_cast %323 : vector<2x32xf32> to vector<1x2x32xf32>
    tpu.vector_store %arg5[%349, %c0_92, %c0_93], %352 {strides = array<i32>} : memref<8x2x64xf32, #tpu.memory_space<vmem>>, vector<1x2x32xf32>,
    %353 = arith.index_cast %288 : i32 to index
    %c0_94 = arith.constant 0 : index
    %c32_95 = arith.constant 32 : index
    %354 = vector.load %arg5[%353, %c0_94, %c32_95] : memref<8x2x64xf32, #tpu.memory_space<vmem>>, vector<1x2x32xf32>
    %355 = vector.shape_cast %354 : vector<1x2x32xf32> to vector<2x32xf32>
    %356 = vector.shape_cast %348 : vector<2x32xf32> to vector<1x2x32xf32>
    tpu.vector_store %arg5[%353, %c0_94, %c32_95], %356 {strides = array<i32>} : memref<8x2x64xf32, #tpu.memory_space<vmem>>, vector<1x2x32xf32>,
    %c5_i32 = arith.constant 5 : i32
    %c7_i32_96 = arith.constant 7 : i32
    %357 = arith.subi %c7_i32_96, %c5_i32 : i32
    %358 = arith.index_cast %c5_i32 : i32 to index
    %c0_97 = arith.constant 0 : index
    %c0_98 = arith.constant 0 : index
    %359 = vector.load %arg6[%358, %c0_97, %c0_98] : memref<8x2x256xf32, #tpu.memory_space<vmem>>, vector<1x2x128xf32>
    %360 = vector.shape_cast %359 : vector<1x2x128xf32> to vector<2x128xf32>
    %cst_99 = arith.constant dense<0.000000e+00> : vector<2x128xf32>
    %361 = tpu.matmul %323, %9, %cst_99 {dimension_numbers = #tpu.dot_dimension_numbers<[1], [0], [0], [1], [0, 0, 1, 1], [], []>} : vector<2x32xf32>, vector<32x128xf32>, vector<2x128xf32> -> vector<2x128xf32>
    %362 = arith.addf %360, %361 : vector<2x128xf32>
    %363 = arith.index_cast %357 : i32 to index
    %c0_100 = arith.constant 0 : index
    %c128_101 = arith.constant 128 : index
    %364 = vector.load %arg6[%363, %c0_100, %c128_101] : memref<8x2x256xf32, #tpu.memory_space<vmem>>, vector<1x2x128xf32>
    %365 = vector.shape_cast %364 : vector<1x2x128xf32> to vector<2x128xf32>
    %cst_102 = arith.constant dense<0.000000e+00> : vector<2x128xf32>
    %366 = tpu.matmul %348, %10, %cst_102 {dimension_numbers = #tpu.dot_dimension_numbers<[1], [0], [0], [1], [0, 0, 1, 1], [], []>} : vector<2x32xf32>, vector<32x128xf32>, vector<2x128xf32> -> vector<2x128xf32>
    %367 = arith.addf %365, %366 : vector<2x128xf32>
    %368 = vector.extract_strided_slice %362 {offsets = [0, 0], sizes = [2, 32], strides = [1, 1]} : vector<2x128xf32> to vector<2x32xf32>
    %369 = arith.negf %368 : vector<2x32xf32>
    %370 = math.exp %369 : vector<2x32xf32>
    %cst_103 = arith.constant 1.000000e+00 : f32
    %371 = vector.broadcast %cst_103 : f32 to vector<2x32xf32>
    %372 = arith.addf %371, %370 : vector<2x32xf32>
    %373 = arith.divf %371, %372 : vector<2x32xf32>
    %374 = vector.extract_strided_slice %362 {offsets = [0, 32], sizes = [2, 32], strides = [1, 1]} : vector<2x128xf32> to vector<2x32xf32>
    %375 = arith.negf %374 : vector<2x32xf32>
    %376 = math.exp %375 : vector<2x32xf32>
    %cst_104 = arith.constant 1.000000e+00 : f32
    %377 = vector.broadcast %cst_104 : f32 to vector<2x32xf32>
    %378 = arith.addf %377, %376 : vector<2x32xf32>
    %379 = arith.divf %377, %378 : vector<2x32xf32>
    %380 = vector.extract_strided_slice %362 {offsets = [0, 64], sizes = [2, 32], strides = [1, 1]} : vector<2x128xf32> to vector<2x32xf32>
    %381 = math.tanh %380 : vector<2x32xf32>
    %382 = vector.extract_strided_slice %362 {offsets = [0, 96], sizes = [2, 32], strides = [1, 1]} : vector<2x128xf32> to vector<2x32xf32>
    %383 = arith.negf %382 : vector<2x32xf32>
    %384 = math.exp %383 : vector<2x32xf32>
    %cst_105 = arith.constant 1.000000e+00 : f32
    %385 = vector.broadcast %cst_105 : f32 to vector<2x32xf32>
    %386 = arith.addf %385, %384 : vector<2x32xf32>
    %387 = arith.divf %385, %386 : vector<2x32xf32>
    %388 = arith.mulf %379, %321 : vector<2x32xf32>
    %389 = arith.mulf %373, %381 : vector<2x32xf32>
    %390 = arith.addf %388, %389 : vector<2x32xf32>
    %391 = math.tanh %390 : vector<2x32xf32>
    %392 = arith.mulf %387, %391 : vector<2x32xf32>
    %393 = vector.extract_strided_slice %367 {offsets = [0, 0], sizes = [2, 32], strides = [1, 1]} : vector<2x128xf32> to vector<2x32xf32>
    %394 = arith.negf %393 : vector<2x32xf32>
    %395 = math.exp %394 : vector<2x32xf32>
    %cst_106 = arith.constant 1.000000e+00 : f32
    %396 = vector.broadcast %cst_106 : f32 to vector<2x32xf32>
    %397 = arith.addf %396, %395 : vector<2x32xf32>
    %398 = arith.divf %396, %397 : vector<2x32xf32>
    %399 = vector.extract_strided_slice %367 {offsets = [0, 32], sizes = [2, 32], strides = [1, 1]} : vector<2x128xf32> to vector<2x32xf32>
    %400 = arith.negf %399 : vector<2x32xf32>
    %401 = math.exp %400 : vector<2x32xf32>
    %cst_107 = arith.constant 1.000000e+00 : f32
    %402 = vector.broadcast %cst_107 : f32 to vector<2x32xf32>
    %403 = arith.addf %402, %401 : vector<2x32xf32>
    %404 = arith.divf %402, %403 : vector<2x32xf32>
    %405 = vector.extract_strided_slice %367 {offsets = [0, 64], sizes = [2, 32], strides = [1, 1]} : vector<2x128xf32> to vector<2x32xf32>
    %406 = math.tanh %405 : vector<2x32xf32>
    %407 = vector.extract_strided_slice %367 {offsets = [0, 96], sizes = [2, 32], strides = [1, 1]} : vector<2x128xf32> to vector<2x32xf32>
    %408 = arith.negf %407 : vector<2x32xf32>
    %409 = math.exp %408 : vector<2x32xf32>
    %cst_108 = arith.constant 1.000000e+00 : f32
    %410 = vector.broadcast %cst_108 : f32 to vector<2x32xf32>
    %411 = arith.addf %410, %409 : vector<2x32xf32>
    %412 = arith.divf %410, %411 : vector<2x32xf32>
    %413 = arith.mulf %404, %346 : vector<2x32xf32>
    %414 = arith.mulf %398, %406 : vector<2x32xf32>
    %415 = arith.addf %413, %414 : vector<2x32xf32>
    %416 = math.tanh %415 : vector<2x32xf32>
    %417 = arith.mulf %412, %416 : vector<2x32xf32>
    %418 = arith.index_cast %c5_i32 : i32 to index
    %c0_109 = arith.constant 0 : index
    %c0_110 = arith.constant 0 : index
    %419 = vector.load %arg5[%418, %c0_109, %c0_110] : memref<8x2x64xf32, #tpu.memory_space<vmem>>, vector<1x2x32xf32>
    %420 = vector.shape_cast %419 : vector<1x2x32xf32> to vector<2x32xf32>
    %421 = vector.shape_cast %392 : vector<2x32xf32> to vector<1x2x32xf32>
    tpu.vector_store %arg5[%418, %c0_109, %c0_110], %421 {strides = array<i32>} : memref<8x2x64xf32, #tpu.memory_space<vmem>>, vector<1x2x32xf32>,
    %422 = arith.index_cast %357 : i32 to index
    %c0_111 = arith.constant 0 : index
    %c32_112 = arith.constant 32 : index
    %423 = vector.load %arg5[%422, %c0_111, %c32_112] : memref<8x2x64xf32, #tpu.memory_space<vmem>>, vector<1x2x32xf32>
    %424 = vector.shape_cast %423 : vector<1x2x32xf32> to vector<2x32xf32>
    %425 = vector.shape_cast %417 : vector<2x32xf32> to vector<1x2x32xf32>
    tpu.vector_store %arg5[%422, %c0_111, %c32_112], %425 {strides = array<i32>} : memref<8x2x64xf32, #tpu.memory_space<vmem>>, vector<1x2x32xf32>,
    %c6_i32 = arith.constant 6 : i32
    %c7_i32_113 = arith.constant 7 : i32
    %426 = arith.subi %c7_i32_113, %c6_i32 : i32
    %427 = arith.index_cast %c6_i32 : i32 to index
    %c0_114 = arith.constant 0 : index
    %c0_115 = arith.constant 0 : index
    %428 = vector.load %arg6[%427, %c0_114, %c0_115] : memref<8x2x256xf32, #tpu.memory_space<vmem>>, vector<1x2x128xf32>
    %429 = vector.shape_cast %428 : vector<1x2x128xf32> to vector<2x128xf32>
    %cst_116 = arith.constant dense<0.000000e+00> : vector<2x128xf32>
    %430 = tpu.matmul %392, %9, %cst_116 {dimension_numbers = #tpu.dot_dimension_numbers<[1], [0], [0], [1], [0, 0, 1, 1], [], []>} : vector<2x32xf32>, vector<32x128xf32>, vector<2x128xf32> -> vector<2x128xf32>
    %431 = arith.addf %429, %430 : vector<2x128xf32>
    %432 = arith.index_cast %426 : i32 to index
    %c0_117 = arith.constant 0 : index
    %c128_118 = arith.constant 128 : index
    %433 = vector.load %arg6[%432, %c0_117, %c128_118] : memref<8x2x256xf32, #tpu.memory_space<vmem>>, vector<1x2x128xf32>
    %434 = vector.shape_cast %433 : vector<1x2x128xf32> to vector<2x128xf32>
    %cst_119 = arith.constant dense<0.000000e+00> : vector<2x128xf32>
    %435 = tpu.matmul %417, %10, %cst_119 {dimension_numbers = #tpu.dot_dimension_numbers<[1], [0], [0], [1], [0, 0, 1, 1], [], []>} : vector<2x32xf32>, vector<32x128xf32>, vector<2x128xf32> -> vector<2x128xf32>
    %436 = arith.addf %434, %435 : vector<2x128xf32>
    %437 = vector.extract_strided_slice %431 {offsets = [0, 0], sizes = [2, 32], strides = [1, 1]} : vector<2x128xf32> to vector<2x32xf32>
    %438 = arith.negf %437 : vector<2x32xf32>
    %439 = math.exp %438 : vector<2x32xf32>
    %cst_120 = arith.constant 1.000000e+00 : f32
    %440 = vector.broadcast %cst_120 : f32 to vector<2x32xf32>
    %441 = arith.addf %440, %439 : vector<2x32xf32>
    %442 = arith.divf %440, %441 : vector<2x32xf32>
    %443 = vector.extract_strided_slice %431 {offsets = [0, 32], sizes = [2, 32], strides = [1, 1]} : vector<2x128xf32> to vector<2x32xf32>
    %444 = arith.negf %443 : vector<2x32xf32>
    %445 = math.exp %444 : vector<2x32xf32>
    %cst_121 = arith.constant 1.000000e+00 : f32
    %446 = vector.broadcast %cst_121 : f32 to vector<2x32xf32>
    %447 = arith.addf %446, %445 : vector<2x32xf32>
    %448 = arith.divf %446, %447 : vector<2x32xf32>
    %449 = vector.extract_strided_slice %431 {offsets = [0, 64], sizes = [2, 32], strides = [1, 1]} : vector<2x128xf32> to vector<2x32xf32>
    %450 = math.tanh %449 : vector<2x32xf32>
    %451 = vector.extract_strided_slice %431 {offsets = [0, 96], sizes = [2, 32], strides = [1, 1]} : vector<2x128xf32> to vector<2x32xf32>
    %452 = arith.negf %451 : vector<2x32xf32>
    %453 = math.exp %452 : vector<2x32xf32>
    %cst_122 = arith.constant 1.000000e+00 : f32
    %454 = vector.broadcast %cst_122 : f32 to vector<2x32xf32>
    %455 = arith.addf %454, %453 : vector<2x32xf32>
    %456 = arith.divf %454, %455 : vector<2x32xf32>
    %457 = arith.mulf %448, %390 : vector<2x32xf32>
    %458 = arith.mulf %442, %450 : vector<2x32xf32>
    %459 = arith.addf %457, %458 : vector<2x32xf32>
    %460 = math.tanh %459 : vector<2x32xf32>
    %461 = arith.mulf %456, %460 : vector<2x32xf32>
    %462 = vector.extract_strided_slice %436 {offsets = [0, 0], sizes = [2, 32], strides = [1, 1]} : vector<2x128xf32> to vector<2x32xf32>
    %463 = arith.negf %462 : vector<2x32xf32>
    %464 = math.exp %463 : vector<2x32xf32>
    %cst_123 = arith.constant 1.000000e+00 : f32
    %465 = vector.broadcast %cst_123 : f32 to vector<2x32xf32>
    %466 = arith.addf %465, %464 : vector<2x32xf32>
    %467 = arith.divf %465, %466 : vector<2x32xf32>
    %468 = vector.extract_strided_slice %436 {offsets = [0, 32], sizes = [2, 32], strides = [1, 1]} : vector<2x128xf32> to vector<2x32xf32>
    %469 = arith.negf %468 : vector<2x32xf32>
    %470 = math.exp %469 : vector<2x32xf32>
    %cst_124 = arith.constant 1.000000e+00 : f32
    %471 = vector.broadcast %cst_124 : f32 to vector<2x32xf32>
    %472 = arith.addf %471, %470 : vector<2x32xf32>
    %473 = arith.divf %471, %472 : vector<2x32xf32>
    %474 = vector.extract_strided_slice %436 {offsets = [0, 64], sizes = [2, 32], strides = [1, 1]} : vector<2x128xf32> to vector<2x32xf32>
    %475 = math.tanh %474 : vector<2x32xf32>
    %476 = vector.extract_strided_slice %436 {offsets = [0, 96], sizes = [2, 32], strides = [1, 1]} : vector<2x128xf32> to vector<2x32xf32>
    %477 = arith.negf %476 : vector<2x32xf32>
    %478 = math.exp %477 : vector<2x32xf32>
    %cst_125 = arith.constant 1.000000e+00 : f32
    %479 = vector.broadcast %cst_125 : f32 to vector<2x32xf32>
    %480 = arith.addf %479, %478 : vector<2x32xf32>
    %481 = arith.divf %479, %480 : vector<2x32xf32>
    %482 = arith.mulf %473, %415 : vector<2x32xf32>
    %483 = arith.mulf %467, %475 : vector<2x32xf32>
    %484 = arith.addf %482, %483 : vector<2x32xf32>
    %485 = math.tanh %484 : vector<2x32xf32>
    %486 = arith.mulf %481, %485 : vector<2x32xf32>
    %487 = arith.index_cast %c6_i32 : i32 to index
    %c0_126 = arith.constant 0 : index
    %c0_127 = arith.constant 0 : index
    %488 = vector.load %arg5[%487, %c0_126, %c0_127] : memref<8x2x64xf32, #tpu.memory_space<vmem>>, vector<1x2x32xf32>
    %489 = vector.shape_cast %488 : vector<1x2x32xf32> to vector<2x32xf32>
    %490 = vector.shape_cast %461 : vector<2x32xf32> to vector<1x2x32xf32>
    tpu.vector_store %arg5[%487, %c0_126, %c0_127], %490 {strides = array<i32>} : memref<8x2x64xf32, #tpu.memory_space<vmem>>, vector<1x2x32xf32>,
    %491 = arith.index_cast %426 : i32 to index
    %c0_128 = arith.constant 0 : index
    %c32_129 = arith.constant 32 : index
    %492 = vector.load %arg5[%491, %c0_128, %c32_129] : memref<8x2x64xf32, #tpu.memory_space<vmem>>, vector<1x2x32xf32>
    %493 = vector.shape_cast %492 : vector<1x2x32xf32> to vector<2x32xf32>
    %494 = vector.shape_cast %486 : vector<2x32xf32> to vector<1x2x32xf32>
    tpu.vector_store %arg5[%491, %c0_128, %c32_129], %494 {strides = array<i32>} : memref<8x2x64xf32, #tpu.memory_space<vmem>>, vector<1x2x32xf32>,
    %c7_i32_130 = arith.constant 7 : i32
    %c7_i32_131 = arith.constant 7 : i32
    %495 = arith.subi %c7_i32_131, %c7_i32_130 : i32
    %496 = arith.index_cast %c7_i32_130 : i32 to index
    %c0_132 = arith.constant 0 : index
    %c0_133 = arith.constant 0 : index
    %497 = vector.load %arg6[%496, %c0_132, %c0_133] : memref<8x2x256xf32, #tpu.memory_space<vmem>>, vector<1x2x128xf32>
    %498 = vector.shape_cast %497 : vector<1x2x128xf32> to vector<2x128xf32>
    %cst_134 = arith.constant dense<0.000000e+00> : vector<2x128xf32>
    %499 = tpu.matmul %461, %9, %cst_134 {dimension_numbers = #tpu.dot_dimension_numbers<[1], [0], [0], [1], [0, 0, 1, 1], [], []>} : vector<2x32xf32>, vector<32x128xf32>, vector<2x128xf32> -> vector<2x128xf32>
    %500 = arith.addf %498, %499 : vector<2x128xf32>
    %501 = arith.index_cast %495 : i32 to index
    %c0_135 = arith.constant 0 : index
    %c128_136 = arith.constant 128 : index
    %502 = vector.load %arg6[%501, %c0_135, %c128_136] : memref<8x2x256xf32, #tpu.memory_space<vmem>>, vector<1x2x128xf32>
    %503 = vector.shape_cast %502 : vector<1x2x128xf32> to vector<2x128xf32>
    %cst_137 = arith.constant dense<0.000000e+00> : vector<2x128xf32>
    %504 = tpu.matmul %486, %10, %cst_137 {dimension_numbers = #tpu.dot_dimension_numbers<[1], [0], [0], [1], [0, 0, 1, 1], [], []>} : vector<2x32xf32>, vector<32x128xf32>, vector<2x128xf32> -> vector<2x128xf32>
    %505 = arith.addf %503, %504 : vector<2x128xf32>
    %506 = vector.extract_strided_slice %500 {offsets = [0, 0], sizes = [2, 32], strides = [1, 1]} : vector<2x128xf32> to vector<2x32xf32>
    %507 = arith.negf %506 : vector<2x32xf32>
    %508 = math.exp %507 : vector<2x32xf32>
    %cst_138 = arith.constant 1.000000e+00 : f32
    %509 = vector.broadcast %cst_138 : f32 to vector<2x32xf32>
    %510 = arith.addf %509, %508 : vector<2x32xf32>
    %511 = arith.divf %509, %510 : vector<2x32xf32>
    %512 = vector.extract_strided_slice %500 {offsets = [0, 32], sizes = [2, 32], strides = [1, 1]} : vector<2x128xf32> to vector<2x32xf32>
    %513 = arith.negf %512 : vector<2x32xf32>
    %514 = math.exp %513 : vector<2x32xf32>
    %cst_139 = arith.constant 1.000000e+00 : f32
    %515 = vector.broadcast %cst_139 : f32 to vector<2x32xf32>
    %516 = arith.addf %515, %514 : vector<2x32xf32>
    %517 = arith.divf %515, %516 : vector<2x32xf32>
    %518 = vector.extract_strided_slice %500 {offsets = [0, 64], sizes = [2, 32], strides = [1, 1]} : vector<2x128xf32> to vector<2x32xf32>
    %519 = math.tanh %518 : vector<2x32xf32>
    %520 = vector.extract_strided_slice %500 {offsets = [0, 96], sizes = [2, 32], strides = [1, 1]} : vector<2x128xf32> to vector<2x32xf32>
    %521 = arith.negf %520 : vector<2x32xf32>
    %522 = math.exp %521 : vector<2x32xf32>
    %cst_140 = arith.constant 1.000000e+00 : f32
    %523 = vector.broadcast %cst_140 : f32 to vector<2x32xf32>
    %524 = arith.addf %523, %522 : vector<2x32xf32>
    %525 = arith.divf %523, %524 : vector<2x32xf32>
    %526 = arith.mulf %517, %459 : vector<2x32xf32>
    %527 = arith.mulf %511, %519 : vector<2x32xf32>
    %528 = arith.addf %526, %527 : vector<2x32xf32>
    %529 = math.tanh %528 : vector<2x32xf32>
    %530 = arith.mulf %525, %529 : vector<2x32xf32>
    %531 = vector.extract_strided_slice %505 {offsets = [0, 0], sizes = [2, 32], strides = [1, 1]} : vector<2x128xf32> to vector<2x32xf32>
    %532 = arith.negf %531 : vector<2x32xf32>
    %533 = math.exp %532 : vector<2x32xf32>
    %cst_141 = arith.constant 1.000000e+00 : f32
    %534 = vector.broadcast %cst_141 : f32 to vector<2x32xf32>
    %535 = arith.addf %534, %533 : vector<2x32xf32>
    %536 = arith.divf %534, %535 : vector<2x32xf32>
    %537 = vector.extract_strided_slice %505 {offsets = [0, 32], sizes = [2, 32], strides = [1, 1]} : vector<2x128xf32> to vector<2x32xf32>
    %538 = arith.negf %537 : vector<2x32xf32>
    %539 = math.exp %538 : vector<2x32xf32>
    %cst_142 = arith.constant 1.000000e+00 : f32
    %540 = vector.broadcast %cst_142 : f32 to vector<2x32xf32>
    %541 = arith.addf %540, %539 : vector<2x32xf32>
    %542 = arith.divf %540, %541 : vector<2x32xf32>
    %543 = vector.extract_strided_slice %505 {offsets = [0, 64], sizes = [2, 32], strides = [1, 1]} : vector<2x128xf32> to vector<2x32xf32>
    %544 = math.tanh %543 : vector<2x32xf32>
    %545 = vector.extract_strided_slice %505 {offsets = [0, 96], sizes = [2, 32], strides = [1, 1]} : vector<2x128xf32> to vector<2x32xf32>
    %546 = arith.negf %545 : vector<2x32xf32>
    %547 = math.exp %546 : vector<2x32xf32>
    %cst_143 = arith.constant 1.000000e+00 : f32
    %548 = vector.broadcast %cst_143 : f32 to vector<2x32xf32>
    %549 = arith.addf %548, %547 : vector<2x32xf32>
    %550 = arith.divf %548, %549 : vector<2x32xf32>
    %551 = arith.mulf %542, %484 : vector<2x32xf32>
    %552 = arith.mulf %536, %544 : vector<2x32xf32>
    %553 = arith.addf %551, %552 : vector<2x32xf32>
    %554 = math.tanh %553 : vector<2x32xf32>
    %555 = arith.mulf %550, %554 : vector<2x32xf32>
    %556 = arith.index_cast %c7_i32_130 : i32 to index
    %c0_144 = arith.constant 0 : index
    %c0_145 = arith.constant 0 : index
    %557 = vector.load %arg5[%556, %c0_144, %c0_145] : memref<8x2x64xf32, #tpu.memory_space<vmem>>, vector<1x2x32xf32>
    %558 = vector.shape_cast %557 : vector<1x2x32xf32> to vector<2x32xf32>
    %559 = vector.shape_cast %530 : vector<2x32xf32> to vector<1x2x32xf32>
    tpu.vector_store %arg5[%556, %c0_144, %c0_145], %559 {strides = array<i32>} : memref<8x2x64xf32, #tpu.memory_space<vmem>>, vector<1x2x32xf32>,
    %560 = arith.index_cast %495 : i32 to index
    %c0_146 = arith.constant 0 : index
    %c32_147 = arith.constant 32 : index
    %561 = vector.load %arg5[%560, %c0_146, %c32_147] : memref<8x2x64xf32, #tpu.memory_space<vmem>>, vector<1x2x32xf32>
    %562 = vector.shape_cast %561 : vector<1x2x32xf32> to vector<2x32xf32>
    %563 = vector.shape_cast %555 : vector<2x32xf32> to vector<1x2x32xf32>
    tpu.vector_store %arg5[%560, %c0_146, %c32_147], %563 {strides = array<i32>} : memref<8x2x64xf32, #tpu.memory_space<vmem>>, vector<1x2x32xf32>,
    %c8_i32 = arith.constant 8 : i32
    return
  }
}

</mosaic_0001>

<llo_original>
// kernel: tpu_custom_call.1
$region0: #{tpu_custom_call.1}
  #allocation0 [shape = 'u32[]', space=smem, size = 0x4, offset = 0x4, fixed_abs, tag = 'smem constant byte address 0x4 - core index']
  #allocation1 [shape = 'u32[72,128]{1,0:T(1,128)}', space=vmem, size = 0x9000, scoped, tag = 'internal scratch']
  #allocation2 [shape = 'f32[8,2,256]{2,1,0:T(2,128)}', space=vmem, size = 0x4000, scoped, tag = 'scratch operand']
  %s0 = inlined_call_operand.hbm [shape: f32[8,2,16], index: 0, kind: input, shape index: {}]
  %s1 = inlined_call_operand.hbm [shape: f32[16,256], index: 1, kind: input, shape index: {}]
  %s2 = inlined_call_operand.hbm [shape: f32[32,128], index: 2, kind: input, shape index: {}]
  %s3 = inlined_call_operand.hbm [shape: f32[32,128], index: 3, kind: input, shape index: {}]
  %s4 = inlined_call_operand.vmem [shape: f32[1,256], index: 4, kind: input, shape index: {}]
  %s5 = inlined_call_operand.hbm [shape: f32[8,2,64], index: 5, kind: output, shape index: {}]
  %s6 = sld [smem:[#allocation0]]
  $region46: #{tpu_custom_call.1} parent=0
    _
  %s8 = ssub.s32 1, %s6
  %s9 = scalar_select 0, %s8, %s6
  $region1: #{tpu_custom_call.1} parent=0
    #allocation3 [shape = 'u8[8192]{0}', space=vmem, size = 0x2000, scoped, tag = 'input window, operand 0, single buffered']
    #allocation4 [shape = 's32[1]{0}', space=sflag, size = 0x4, scoped, tag = 'scoped memory for tpu_custom_call.1']
    #allocation5 [shape = 's32[1]{0}', space=sflag, size = 0x4, scoped, tag = 'scoped memory for tpu_custom_call.1']
    #allocation6 [shape = 'u8[16384]{0}', space=vmem, size = 0x4000, scoped, tag = 'input window, operand 1, single buffered']
    #allocation7 [shape = 's32[1]{0}', space=sflag, size = 0x4, scoped, tag = 'scoped memory for tpu_custom_call.1']
    #allocation8 [shape = 'u8[16384]{0}', space=vmem, size = 0x4000, scoped, tag = 'input window, operand 2, single buffered']
    #allocation9 [shape = 'u8[16384]{0}', space=vmem, size = 0x4000, scoped, tag = 'input window, operand 3, single buffered']
    #allocation10 [shape = 's32[1]{0}', space=sflag, size = 0x4, scoped, tag = 'scoped memory for tpu_custom_call.1']
    #allocation11 [shape = 'u8[8192]{0}', space=vmem, size = 0x2000, scoped, tag = 'output window, operand 0, single buffered']
    %10 = vsyncpa [#allocation4], 0
    %11 = vsyncpa [#allocation7], 0
    %12 = vsyncpa [#allocation10], 0
    %13 = vsyncpa [#allocation5], 0
    // Predicated region
    $region2: #{tpu_custom_call.1} parent=1 // pred_check
      _
    $region3: #{tpu_custom_call.1} parent=1 // pred_check_branch
      %15 = sbr.rel (0) target = $region5
    $region4: #{tpu_custom_call.1} parent=1 // pred_region
      %17 = vsyncadd [#allocation4], 0
      %s18 = sshll.u32 %s0, 4
      %s19 = int_to_ptr.hbm [resolvable:$true] %s18
      %s20 = sshll.u32 [#allocation3], 4
      %s21 = int_to_ptr.vmem [resolvable:$true] %s20
      %26 = dma.hbm_to_vmem [thread:$0]  %s19, 256, %s21, [#allocation4], 32, 32, 2
    $region5: #{tpu_custom_call.1} parent=1 // pred_fallthru
      _
    // Predicated region
    $region6: #{tpu_custom_call.1} parent=1 // pred_check
      _
    $region7: #{tpu_custom_call.1} parent=1 // pred_check_branch
      %28 = sbr.rel (0) target = $region9
    $region8: #{tpu_custom_call.1} parent=1 // pred_region
      %30 = vsyncadd [#allocation7], 0
      %s31 = sshll.u32 %s1, 4
      %s32 = int_to_ptr.hbm [resolvable:$true] %s31
      %s33 = sshll.u32 [#allocation6], 4
      %s34 = int_to_ptr.vmem [resolvable:$true] %s33
      %39 = dma.hbm_to_vmem [thread:$0]  %s32, 512, %s34, [#allocation7], 256, 256, 16
    $region9: #{tpu_custom_call.1} parent=1 // pred_fallthru
      _
    // Predicated region
    $region10: #{tpu_custom_call.1} parent=1 // pred_check
      _
    $region11: #{tpu_custom_call.1} parent=1 // pred_check_branch
      %41 = sbr.rel (0) target = $region13
    $region12: #{tpu_custom_call.1} parent=1 // pred_region
      %43 = vsyncadd [#allocation7], 0
      %s44 = sshll.u32 %s2, 4
      %s45 = int_to_ptr.hbm [resolvable:$true] %s44
      %s46 = sshll.u32 [#allocation8], 4
      %s47 = int_to_ptr.vmem [resolvable:$true] %s46
      %52 = dma.hbm_to_vmem [thread:$0]  %s45, 512, %s47, [#allocation7], 128, 128, 8
    $region13: #{tpu_custom_call.1} parent=1 // pred_fallthru
      _
    // Predicated region
    $region14: #{tpu_custom_call.1} parent=1 // pred_check
      _
    $region15: #{tpu_custom_call.1} parent=1 // pred_check_branch
      %54 = sbr.rel (0) target = $region17
    $region16: #{tpu_custom_call.1} parent=1 // pred_region
      %56 = vsyncadd [#allocation10], 0
      %s57 = sshll.u32 %s3, 4
      %s58 = int_to_ptr.hbm [resolvable:$true] %s57
      %s59 = sshll.u32 [#allocation9], 4
      %s60 = int_to_ptr.vmem [resolvable:$true] %s59
      %65 = dma.hbm_to_vmem [thread:$0]  %s58, 512, %s60, [#allocation10], 128, 128, 8
    $region17: #{tpu_custom_call.1} parent=1 // pred_fallthru
      _
    // Predicated region
    $region18: #{tpu_custom_call.1} parent=1 // pred_check
      _
    $region19: #{tpu_custom_call.1} parent=1 // pred_check_branch
      %67 = sbr.rel (0) target = $region21
    $region20: #{tpu_custom_call.1} parent=1 // pred_region
      _
    $region21: #{tpu_custom_call.1} parent=1 // pred_fallthru
      _
    // Predicated region
    $region22: #{tpu_custom_call.1} parent=1 // pred_check
      _
    $region23: #{tpu_custom_call.1} parent=1 // pred_check_branch
      %69 = sbr.rel (0) target = $region25
    $region24: #{tpu_custom_call.1} parent=1 // pred_region
      %71 = dma.done [#allocation4], 256
    $region25: #{tpu_custom_call.1} parent=1 // pred_fallthru
      _
    // Predicated region
    $region26: #{tpu_custom_call.1} parent=1 // pred_check
      _
    $region27: #{tpu_custom_call.1} parent=1 // pred_check_branch
      %73 = sbr.rel (0) target = $region29
    $region28: #{tpu_custom_call.1} parent=1 // pred_region
      %75 = dma.done [#allocation7], 512
    $region29: #{tpu_custom_call.1} parent=1 // pred_fallthru
      _
    // Predicated region
    $region30: #{tpu_custom_call.1} parent=1 // pred_check
      _
    $region31: #{tpu_custom_call.1} parent=1 // pred_check_branch
      %77 = sbr.rel (0) target = $region33
    $region32: #{tpu_custom_call.1} parent=1 // pred_region
      %79 = dma.done [#allocation7], 512
    $region33: #{tpu_custom_call.1} parent=1 // pred_fallthru
      _
    // Predicated region
    $region34: #{tpu_custom_call.1} parent=1 // pred_check
      _
    $region35: #{tpu_custom_call.1} parent=1 // pred_check_branch
      %81 = sbr.rel (0) target = $region37
    $region36: #{tpu_custom_call.1} parent=1 // pred_region
      %83 = dma.done [#allocation10], 512
    $region37: #{tpu_custom_call.1} parent=1 // pred_fallthru
      _
    %v84 = vld [vmem:[#allocation3] sm:$0x3]
    %v85 = vld [vmem:[#allocation3 + $0x2] sm:$0x3]
    %v86 = vld [vmem:[#allocation3 + $0x4] sm:$0x3]
    %v87 = vld [vmem:[#allocation3 + $0x6] sm:$0x3]
    %v88 = vld [vmem:[#allocation3 + $0x8] sm:$0x3]
    %v89 = vld [vmem:[#allocation3 + $0xa] sm:$0x3]
    %v90 = vld [vmem:[#allocation3 + $0xc] sm:$0x3]
    %v91 = vld [vmem:[#allocation3 + $0xe] sm:$0x3]
    %v92 = vld [vmem:[#allocation6] sm:$0xff]
    %v93 = vld [vmem:[#allocation6 + $0x8] sm:$0xff]
    %v94 = vld [vmem:[#allocation6 + $0x10] sm:$0xff]
    %v95 = vld [vmem:[#allocation6 + $0x18] sm:$0xff]
    %v96 = vld [vmem:[%s4] sm:$0x3]
    %v98 = vperm.slane %v96, 0
    %v99 = vperm.slane %v96, 1
    %110 = vst [vmem:[#allocation1] ss:$4 sm:$0xff] %v84
    %s111 = scalar_lea.vmem [#allocation1], 1
    %112 = vst [vmem:[%s111] ss:$4 sm:$0xff] %v85
    %s113 = scalar_lea.vmem [#allocation1], 2
    %114 = vst [vmem:[%s113] ss:$4 sm:$0xff] %v86
    %s115 = scalar_lea.vmem [#allocation1], 3
    %116 = vst [vmem:[%s115] ss:$4 sm:$0xff] %v87
    %s117 = scalar_lea.vmem [#allocation1], 32
    %118 = vst [vmem:[%s117] ss:$4 sm:$0xff] %v88
    %s119 = scalar_lea.vmem [#allocation1], 33
    %120 = vst [vmem:[%s119] ss:$4 sm:$0xff] %v89
    %s121 = scalar_lea.vmem [#allocation1], 34
    %122 = vst [vmem:[%s121] ss:$4 sm:$0xff] %v90
    %s123 = scalar_lea.vmem [#allocation1], 35
    %124 = vst [vmem:[%s123] ss:$4 sm:$0xff] %v91
    %v125 = vld.sshfl [vmem:[#allocation1] sm:$0xff pattern:$0x73625140]
    %v126 = vld.sshfl [vmem:[#allocation1 + $0x20] sm:$0xff pattern:$0x73625140]
    %vm127 = vcmask 130048
    %v128 = vsel %vm127, %v125, 0
    %v130 = vsel %vm127, %v126, 0
    %132 = vmatpush.msra.mxu0 0.0
    %133 = vmatpush.msra.mxu0 0.0
    %134 = vmatpush.msra.mxu0 0.0
    %135 = vmatpush.msra.mxu0 0.0
    %136 = vmatpush.msra.mxu0 0.0
    %137 = vmatpush.msra.mxu0 0.0
    %138 = vmatpush.msra.mxu0 0.0
    %139 = vmatpush.msra.mxu0 0.0
    %140 = vmatpush.msra.mxu0 0.0
    %141 = vmatpush.msra.mxu0 0.0
    %142 = vmatpush.msra.mxu0 0.0
    %143 = vmatpush.msra.mxu0 0.0
    %144 = vmatpush.msra.mxu0 0.0
    %145 = vmatpush.msra.mxu0 0.0
    %146 = vmatpush.msra.mxu0 %v94
    %147 = vmatpush.msra.mxu0 %v92
    %148 = vmatmul.f32.gmra.mxu0 %v128
    %v149 = vpop.f32.mrf.mxu0
    %v150 = vadd.f32 %v98, %v149
    %151 = vmatmul.f32.gmra.mxu0 %v130
    %v152 = vpop.f32.mrf.mxu0
    %v153 = vadd.f32 %v98, %v152
    %154 = vdwg.mxu0
    %155 = vmatpush.msra.mxu0 0.0
    %156 = vmatpush.msra.mxu0 0.0
    %157 = vmatpush.msra.mxu0 0.0
    %158 = vmatpush.msra.mxu0 0.0
    %159 = vmatpush.msra.mxu0 0.0
    %160 = vmatpush.msra.mxu0 0.0
    %161 = vmatpush.msra.mxu0 0.0
    %162 = vmatpush.msra.mxu0 0.0
    %163 = vmatpush.msra.mxu0 0.0
    %164 = vmatpush.msra.mxu0 0.0
    %165 = vmatpush.msra.mxu0 0.0
    %166 = vmatpush.msra.mxu0 0.0
    %167 = vmatpush.msra.mxu0 0.0
    %168 = vmatpush.msra.mxu0 0.0
    %169 = vmatpush.msra.mxu0 %v95
    %170 = vmatpush.msra.mxu0 %v93
    %171 = vmatmul.f32.gmra.mxu0 %v128
    %v172 = vpop.f32.mrf.mxu0
    %v173 = vadd.f32 %v99, %v172
    %174 = vmatmul.f32.gmra.mxu0 %v130
    %v175 = vpop.f32.mrf.mxu0
    %v176 = vadd.f32 %v99, %v175
    %177 = vdwg.mxu0
    %v182 = vrot.slane %v173, 6
    %v183 = vrot.slane %v176, 6
    %vm184 = vcmask 1041408
    %v185 = vsel %vm184, %v150, %v182
    %vm186 = vcmask 1043458
    %v187 = vsel %vm186, %v150, %v182
    %v188 = vrot.slane %v187, 2
    %vm189 = vcmask 1045508
    %v190 = vsel %vm189, %v150, %v182
    %v191 = vrot.slane %v190, 4
    %vm192 = vcmask 1045504
    %v193 = vsel %vm192, %v182, %v150
    %v194 = vrot.slane %v193, 6
    %v195 = vsel %vm184, %v153, %v183
    %v196 = vsel %vm186, %v153, %v183
    %v197 = vrot.slane %v196, 2
    %v198 = vsel %vm189, %v153, %v183
    %v199 = vrot.slane %v198, 4
    %v200 = vsel %vm192, %v183, %v153
    %v201 = vrot.slane %v200, 6
    %210 = vst [vmem:[#allocation2] sm:$0xf] %v185
    %211 = vst [vmem:[#allocation2 + $0x4] sm:$0xf] %v188
    %212 = vst [vmem:[#allocation2 + $0x8] sm:$0xf] %v191
    %213 = vst [vmem:[#allocation2 + $0xc] sm:$0xf] %v194
    %214 = vst [vmem:[#allocation2 + $0x10] sm:$0xf] %v195
    %215 = vst [vmem:[#allocation2 + $0x14] sm:$0xf] %v197
    %216 = vst [vmem:[#allocation2 + $0x18] sm:$0xf] %v199
    %217 = vst [vmem:[#allocation2 + $0x1c] sm:$0xf] %v201
    %v218 = vld [vmem:[#allocation8] sm:$0xff]
    %v219 = vld [vmem:[#allocation8 + $0x8] sm:$0xff]
    %v220 = vld [vmem:[#allocation8 + $0x10] sm:$0xff]
    %v221 = vld [vmem:[#allocation8 + $0x18] sm:$0xff]
    %v222 = vld [vmem:[#allocation9] sm:$0xff]
    %v223 = vld [vmem:[#allocation9 + $0x8] sm:$0xff]
    %v224 = vld [vmem:[#allocation9 + $0x10] sm:$0xff]
    %v225 = vld [vmem:[#allocation9 + $0x18] sm:$0xff]
    %v226 = vld [vmem:[#allocation2] sm:$0x3]
    %vm227 = vcmask 261120
    %v229 = vsel %vm227, 0.0, 0
    %231 = vmatpush.msra.mxu0 0.0
    %232 = vmatpush.msra.mxu0 0.0
    %233 = vmatpush.msra.mxu0 0.0
    %234 = vmatpush.msra.mxu0 0.0
    %235 = vmatpush.msra.mxu0 0.0
    %236 = vmatpush.msra.mxu0 0.0
    %237 = vmatpush.msra.mxu0 0.0
    %238 = vmatpush.msra.mxu0 0.0
    %239 = vmatpush.msra.mxu0 0.0
    %240 = vmatpush.msra.mxu0 0.0
    %241 = vmatpush.msra.mxu0 0.0
    %242 = vmatpush.msra.mxu0 0.0
    %243 = vmatpush.msra.mxu0 %v221
    %244 = vmatpush.msra.mxu0 %v220
    %245 = vmatpush.msra.mxu0 %v219
    %246 = vmatpush.msra.mxu0 %v218
    %247 = vmatmul.f32.gmra.mxu0 %v229
    %v248 = vpop.f32.mrf.mxu0
    %v249 = vadd.f32 0.0, %v248
    %250 = vdwg.mxu0
    %v251 = vadd.f32 %v226, %v249
    %s252 = scalar_lea.vmem [#allocation2], 28
    %v253 = vld [vmem:[%s252 + $0x2] sm:$0x3]
    %254 = vmatpush.msra.mxu0 0.0
    %255 = vmatpush.msra.mxu0 0.0
    %256 = vmatpush.msra.mxu0 0.0
    %257 = vmatpush.msra.mxu0 0.0
    %258 = vmatpush.msra.mxu0 0.0
    %259 = vmatpush.msra.mxu0 0.0
    %260 = vmatpush.msra.mxu0 0.0
    %261 = vmatpush.msra.mxu0 0.0
    %262 = vmatpush.msra.mxu0 0.0
    %263 = vmatpush.msra.mxu0 0.0
    %264 = vmatpush.msra.mxu0 0.0
    %265 = vmatpush.msra.mxu0 0.0
    %266 = vmatpush.msra.mxu0 %v225
    %267 = vmatpush.msra.mxu0 %v224
    %268 = vmatpush.msra.mxu0 %v223
    %269 = vmatpush.msra.mxu0 %v222
    %270 = vmatmul.f32.gmra.mxu0 %v229
    %v271 = vpop.f32.mrf.mxu0
    %v272 = vadd.f32 0.0, %v271
    %273 = vdwg.mxu0
    %v274 = vadd.f32 %v253, %v272
    %v275 = vxor.u32 %v251, 2147483648
    %v276 = vmul.f32 %v275, 1.442695
    %v277 = vpow.pop %v276
    %v278 = vadd.f32 %v277, 1.0
    %v279 = vrcp.pop %v278
    %v280 = vmul.f32 %v278, %v279
    %v281 = vsub.f32 1.0, %v280
    %v282 = vmul.f32 %v279, %v281
    %v283 = vadd.f32 %v279, %v282
    %vm284 = vweird.f32 %v278
    %vm285 = vweird.f32 %v279
    %vm286 = vmor %vm284, %vm285
    %v287 = vsel %vm286, %v279, %v283
    %v288 = vand.u32 2147483647, %v278
    %vm289 = vcmp.eq.f32.partialorder %v288, 8.507059e+37
    %v290 = vand.u32 %v278, 2147483648
    %v291 = vor.u32 1.1754944e-38, %v290
    %v292 = vsel %vm289, %v291, %v287
    %v293 = vmul.f32 1.0, %v292
    %v294 = vtanh.pop %v251
    %v295 = vmul.f32 %v293, 0.0
    %297 = vrot.lane.b32.xlu0 %v294, 64
    %v298 = vpop.permute.xlu0 %297
    %v300 = vmul.f32 %v293, %v298
    %302 = vrot.lane.b32.xlu0 %v300, 32
    %v303 = vpop.permute.xlu0 %302
    %v305 = vadd.f32 %v295, %v303
    %v306 = vtanh.pop %v305
    %308 = vrot.lane.b32.xlu0 %v306, 64
    %v309 = vpop.permute.xlu0 %308
    %v311 = vmul.f32 %v293, %v309
    %v312 = vxor.u32 %v274, 2147483648
    %v313 = vmul.f32 %v312, 1.442695
    %v314 = vpow.pop %v313
    %v315 = vadd.f32 %v314, 1.0
    %v316 = vrcp.pop %v315
    %v317 = vmul.f32 %v315, %v316
    %v318 = vsub.f32 1.0, %v317
    %v319 = vmul.f32 %v316, %v318
    %v320 = vadd.f32 %v316, %v319
    %vm321 = vweird.f32 %v315
    %vm322 = vweird.f32 %v316
    %vm323 = vmor %vm321, %vm322
    %v324 = vsel %vm323, %v316, %v320
    %v325 = vand.u32 2147483647, %v315
    %vm326 = vcmp.eq.f32.partialorder %v325, 8.507059e+37
    %v327 = vand.u32 %v315, 2147483648
    %v328 = vor.u32 1.1754944e-38, %v327
    %v329 = vsel %vm326, %v328, %v324
    %v330 = vmul.f32 1.0, %v329
    %v331 = vtanh.pop %v274
    %v332 = vmul.f32 %v330, 0.0
    %334 = vrot.lane.b32.xlu0 %v331, 64
    %v335 = vpop.permute.xlu0 %334
    %v337 = vmul.f32 %v330, %v335
    %339 = vrot.lane.b32.xlu0 %v337, 32
    %v340 = vpop.permute.xlu0 %339
    %v342 = vadd.f32 %v332, %v340
    %v343 = vtanh.pop %v342
    %345 = vrot.lane.b32.xlu0 %v343, 64
    %v346 = vpop.permute.xlu0 %345
    %v348 = vmul.f32 %v330, %v346
    %350 = vst [vmem:[#allocation1] ss:$4 sm:$0xff] %v311
    %v351 = vld.sshfl [vmem:[#allocation1] sm:$0xff pattern:$0x73625140]
    %352 = vrot.lane.b32.xlu0 %v351, 32
    %v353 = vpop.permute.xlu0 %352
    %vm355 = vcmask 254976
    %356 = vst.msk [vmem:[#allocation11] sm:$0x3] %vm355, %v353
    %358 = vst [vmem:[#allocation1] ss:$4 sm:$0xff] %v348
    %v359 = vld.sshfl [vmem:[#allocation1] sm:$0xff pattern:$0x73625140]
    %360 = vrot.lane.b32.xlu0 %v359, 64
    %v361 = vpop.permute.xlu0 %360
    %s363 = scalar_lea.vmem [#allocation11], 14
    %vm364 = vcmask 517376
    %365 = vst.msk [vmem:[%s363] sm:$0x3] %vm364, %v361
    %s366 = scalar_lea.vmem [#allocation2], 4
    %v367 = vld [vmem:[%s366] sm:$0x3]
    %368 = vst [vmem:[#allocation1] ss:$4 sm:$0xff] %v311
    %v369 = vld.sshfl [vmem:[#allocation1] sm:$0xff pattern:$0x73625140]
    %370 = vrot.lane.b32.xlu0 %v369, 32
    %v371 = vpop.permute.xlu0 %370
    %v372 = vsel %vm227, %v371, 0
    %374 = vmatpush.msra.mxu0 0.0
    %375 = vmatpush.msra.mxu0 0.0
    %376 = vmatpush.msra.mxu0 0.0
    %377 = vmatpush.msra.mxu0 0.0
    %378 = vmatpush.msra.mxu0 0.0
    %379 = vmatpush.msra.mxu0 0.0
    %380 = vmatpush.msra.mxu0 0.0
    %381 = vmatpush.msra.mxu0 0.0
    %382 = vmatpush.msra.mxu0 0.0
    %383 = vmatpush.msra.mxu0 0.0
    %384 = vmatpush.msra.mxu0 0.0
    %385 = vmatpush.msra.mxu0 0.0
    %386 = vmatpush.msra.mxu0 %v221
    %387 = vmatpush.msra.mxu0 %v220
    %388 = vmatpush.msra.mxu0 %v219
    %389 = vmatpush.msra.mxu0 %v218
    %390 = vmatmul.f32.gmra.mxu0 %v372
    %v391 = vpop.f32.mrf.mxu0
    %v392 = vadd.f32 0.0, %v391
    %393 = vdwg.mxu0
    %v394 = vadd.f32 %v367, %v392
    %s395 = scalar_lea.vmem [#allocation2], 24
    %v396 = vld [vmem:[%s395 + $0x2] sm:$0x3]
    %397 = vst [vmem:[#allocation1] ss:$4 sm:$0xff] %v348
    %v398 = vld.sshfl [vmem:[#allocation1] sm:$0xff pattern:$0x73625140]
    %399 = vrot.lane.b32.xlu0 %v398, 32
    %v400 = vpop.permute.xlu0 %399
    %v401 = vsel %vm227, %v400, 0
    %403 = vmatpush.msra.mxu0 0.0
    %404 = vmatpush.msra.mxu0 0.0
    %405 = vmatpush.msra.mxu0 0.0
    %406 = vmatpush.msra.mxu0 0.0
    %407 = vmatpush.msra.mxu0 0.0
    %408 = vmatpush.msra.mxu0 0.0
    %409 = vmatpush.msra.mxu0 0.0
    %410 = vmatpush.msra.mxu0 0.0
    %411 = vmatpush.msra.mxu0 0.0
    %412 = vmatpush.msra.mxu0 0.0
    %413 = vmatpush.msra.mxu0 0.0
    %414 = vmatpush.msra.mxu0 0.0
    %415 = vmatpush.msra.mxu0 %v225
    %416 = vmatpush.msra.mxu0 %v224
    %417 = vmatpush.msra.mxu0 %v223
    %418 = vmatpush.msra.mxu0 %v222
    %419 = vmatmul.f32.gmra.mxu0 %v401
    %v420 = vpop.f32.mrf.mxu0
    %v421 = vadd.f32 0.0, %v420
    %422 = vdwg.mxu0
    %v423 = vadd.f32 %v396, %v421
    %v424 = vxor.u32 %v394, 2147483648
    %v425 = vmul.f32 %v424, 1.442695
    %v426 = vpow.pop %v425
    %v427 = vadd.f32 %v426, 1.0
    %v428 = vrcp.pop %v427
    %v429 = vmul.f32 %v427, %v428
    %v430 = vsub.f32 1.0, %v429
    %v431 = vmul.f32 %v428, %v430
    %v432 = vadd.f32 %v428, %v431
    %vm433 = vweird.f32 %v427
    %vm434 = vweird.f32 %v428
    %vm435 = vmor %vm433, %vm434
    %v436 = vsel %vm435, %v428, %v432
    %v437 = vand.u32 2147483647, %v427
    %vm438 = vcmp.eq.f32.partialorder %v437, 8.507059e+37
    %v439 = vand.u32 %v427, 2147483648
    %v440 = vor.u32 1.1754944e-38, %v439
    %v441 = vsel %vm438, %v440, %v436
    %v442 = vmul.f32 1.0, %v441
    %v443 = vtanh.pop %v394
    %v444 = vmul.f32 %v442, %v305
    %446 = vrot.lane.b32.xlu0 %v443, 64
    %v447 = vpop.permute.xlu0 %446
    %v449 = vmul.f32 %v442, %v447
    %451 = vrot.lane.b32.xlu0 %v449, 32
    %v452 = vpop.permute.xlu0 %451
    %v454 = vadd.f32 %v444, %v452
    %v455 = vtanh.pop %v454
    %457 = vrot.lane.b32.xlu0 %v455, 64
    %v458 = vpop.permute.xlu0 %457
    %v460 = vmul.f32 %v442, %v458
    %v461 = vxor.u32 %v423, 2147483648
    %v462 = vmul.f32 %v461, 1.442695
    %v463 = vpow.pop %v462
    %v464 = vadd.f32 %v463, 1.0
    %v465 = vrcp.pop %v464
    %v466 = vmul.f32 %v464, %v465
    %v467 = vsub.f32 1.0, %v466
    %v468 = vmul.f32 %v465, %v467
    %v469 = vadd.f32 %v465, %v468
    %vm470 = vweird.f32 %v464
    %vm471 = vweird.f32 %v465
    %vm472 = vmor %vm470, %vm471
    %v473 = vsel %vm472, %v465, %v469
    %v474 = vand.u32 2147483647, %v464
    %vm475 = vcmp.eq.f32.partialorder %v474, 8.507059e+37
    %v476 = vand.u32 %v464, 2147483648
    %v477 = vor.u32 1.1754944e-38, %v476
    %v478 = vsel %vm475, %v477, %v473
    %v479 = vmul.f32 1.0, %v478
    %v480 = vtanh.pop %v423
    %v481 = vmul.f32 %v479, %v342
    %483 = vrot.lane.b32.xlu0 %v480, 64
    %v484 = vpop.permute.xlu0 %483
    %v486 = vmul.f32 %v479, %v484
    %488 = vrot.lane.b32.xlu0 %v486, 32
    %v489 = vpop.permute.xlu0 %488
    %v491 = vadd.f32 %v481, %v489
    %v492 = vtanh.pop %v491
    %494 = vrot.lane.b32.xlu0 %v492, 64
    %v495 = vpop.permute.xlu0 %494
    %v497 = vmul.f32 %v479, %v495
    %499 = vst [vmem:[#allocation1] ss:$4 sm:$0xff] %v460
    %v500 = vld.sshfl [vmem:[#allocation1] sm:$0xff pattern:$0x73625140]
    %501 = vrot.lane.b32.xlu0 %v500, 32
    %v502 = vpop.permute.xlu0 %501
    %s504 = scalar_lea.vmem [#allocation11], 2
    %505 = vst.msk [vmem:[%s504] sm:$0x3] %vm355, %v502
    %507 = vst [vmem:[#allocation1] ss:$4 sm:$0xff] %v497
    %v508 = vld.sshfl [vmem:[#allocation1] sm:$0xff pattern:$0x73625140]
    %509 = vrot.lane.b32.xlu0 %v508, 64
    %v510 = vpop.permute.xlu0 %509
    %s512 = scalar_lea.vmem [#allocation11], 12
    %513 = vst.msk [vmem:[%s512] sm:$0x3] %vm364, %v510
    %s514 = scalar_lea.vmem [#allocation2], 8
    %v515 = vld [vmem:[%s514] sm:$0x3]
    %516 = vst [vmem:[#allocation1] ss:$4 sm:$0xff] %v460
    %v517 = vld.sshfl [vmem:[#allocation1] sm:$0xff pattern:$0x73625140]
    %518 = vrot.lane.b32.xlu0 %v517, 32
    %v519 = vpop.permute.xlu0 %518
    %v520 = vsel %vm227, %v519, 0
    %522 = vmatpush.msra.mxu0 0.0
    %523 = vmatpush.msra.mxu0 0.0
    %524 = vmatpush.msra.mxu0 0.0
    %525 = vmatpush.msra.mxu0 0.0
    %526 = vmatpush.msra.mxu0 0.0
    %527 = vmatpush.msra.mxu0 0.0
    %528 = vmatpush.msra.mxu0 0.0
    %529 = vmatpush.msra.mxu0 0.0
    %530 = vmatpush.msra.mxu0 0.0
    %531 = vmatpush.msra.mxu0 0.0
    %532 = vmatpush.msra.mxu0 0.0
    %533 = vmatpush.msra.mxu0 0.0
    %534 = vmatpush.msra.mxu0 %v221
    %535 = vmatpush.msra.mxu0 %v220
    %536 = vmatpush.msra.mxu0 %v219
    %537 = vmatpush.msra.mxu0 %v218
    %538 = vmatmul.f32.gmra.mxu0 %v520
    %v539 = vpop.f32.mrf.mxu0
    %v540 = vadd.f32 0.0, %v539
    %541 = vdwg.mxu0
    %v542 = vadd.f32 %v515, %v540
    %s543 = scalar_lea.vmem [#allocation2], 20
    %v544 = vld [vmem:[%s543 + $0x2] sm:$0x3]
    %545 = vst [vmem:[#allocation1] ss:$4 sm:$0xff] %v497
    %v546 = vld.sshfl [vmem:[#allocation1] sm:$0xff pattern:$0x73625140]
    %547 = vrot.lane.b32.xlu0 %v546, 32
    %v548 = vpop.permute.xlu0 %547
    %v549 = vsel %vm227, %v548, 0
    %551 = vmatpush.msra.mxu0 0.0
    %552 = vmatpush.msra.mxu0 0.0
    %553 = vmatpush.msra.mxu0 0.0
    %554 = vmatpush.msra.mxu0 0.0
    %555 = vmatpush.msra.mxu0 0.0
    %556 = vmatpush.msra.mxu0 0.0
    %557 = vmatpush.msra.mxu0 0.0
    %558 = vmatpush.msra.mxu0 0.0
    %559 = vmatpush.msra.mxu0 0.0
    %560 = vmatpush.msra.mxu0 0.0
    %561 = vmatpush.msra.mxu0 0.0
    %562 = vmatpush.msra.mxu0 0.0
    %563 = vmatpush.msra.mxu0 %v225
    %564 = vmatpush.msra.mxu0 %v224
    %565 = vmatpush.msra.mxu0 %v223
    %566 = vmatpush.msra.mxu0 %v222
    %567 = vmatmul.f32.gmra.mxu0 %v549
    %v568 = vpop.f32.mrf.mxu0
    %v569 = vadd.f32 0.0, %v568
    %570 = vdwg.mxu0
    %v571 = vadd.f32 %v544, %v569
    %v572 = vxor.u32 %v542, 2147483648
    %v573 = vmul.f32 %v572, 1.442695
    %v574 = vpow.pop %v573
    %v575 = vadd.f32 %v574, 1.0
    %v576 = vrcp.pop %v575
    %v577 = vmul.f32 %v575, %v576
    %v578 = vsub.f32 1.0, %v577
    %v579 = vmul.f32 %v576, %v578
    %v580 = vadd.f32 %v576, %v579
    %vm581 = vweird.f32 %v575
    %vm582 = vweird.f32 %v576
    %vm583 = vmor %vm581, %vm582
    %v584 = vsel %vm583, %v576, %v580
    %v585 = vand.u32 2147483647, %v575
    %vm586 = vcmp.eq.f32.partialorder %v585, 8.507059e+37
    %v587 = vand.u32 %v575, 2147483648
    %v588 = vor.u32 1.1754944e-38, %v587
    %v589 = vsel %vm586, %v588, %v584
    %v590 = vmul.f32 1.0, %v589
    %v591 = vtanh.pop %v542
    %v592 = vmul.f32 %v590, %v454
    %594 = vrot.lane.b32.xlu0 %v591, 64
    %v595 = vpop.permute.xlu0 %594
    %v597 = vmul.f32 %v590, %v595
    %599 = vrot.lane.b32.xlu0 %v597, 32
    %v600 = vpop.permute.xlu0 %599
    %v602 = vadd.f32 %v592, %v600
    %v603 = vtanh.pop %v602
    %605 = vrot.lane.b32.xlu0 %v603, 64
    %v606 = vpop.permute.xlu0 %605
    %v608 = vmul.f32 %v590, %v606
    %v609 = vxor.u32 %v571, 2147483648
    %v610 = vmul.f32 %v609, 1.442695
    %v611 = vpow.pop %v610
    %v612 = vadd.f32 %v611, 1.0
    %v613 = vrcp.pop %v612
    %v614 = vmul.f32 %v612, %v613
    %v615 = vsub.f32 1.0, %v614
    %v616 = vmul.f32 %v613, %v615
    %v617 = vadd.f32 %v613, %v616
    %vm618 = vweird.f32 %v612
    %vm619 = vweird.f32 %v613
    %vm620 = vmor %vm618, %vm619
    %v621 = vsel %vm620, %v613, %v617
    %v622 = vand.u32 2147483647, %v612
    %vm623 = vcmp.eq.f32.partialorder %v622, 8.507059e+37
    %v624 = vand.u32 %v612, 2147483648
    %v625 = vor.u32 1.1754944e-38, %v624
    %v626 = vsel %vm623, %v625, %v621
    %v627 = vmul.f32 1.0, %v626
    %v628 = vtanh.pop %v571
    %v629 = vmul.f32 %v627, %v491
    %631 = vrot.lane.b32.xlu0 %v628, 64
    %v632 = vpop.permute.xlu0 %631
    %v634 = vmul.f32 %v627, %v632
    %636 = vrot.lane.b32.xlu0 %v634, 32
    %v637 = vpop.permute.xlu0 %636
    %v639 = vadd.f32 %v629, %v637
    %v640 = vtanh.pop %v639
    %642 = vrot.lane.b32.xlu0 %v640, 64
    %v643 = vpop.permute.xlu0 %642
    %v645 = vmul.f32 %v627, %v643
    %647 = vst [vmem:[#allocation1] ss:$4 sm:$0xff] %v608
    %v648 = vld.sshfl [vmem:[#allocation1] sm:$0xff pattern:$0x73625140]
    %649 = vrot.lane.b32.xlu0 %v648, 32
    %v650 = vpop.permute.xlu0 %649
    %s652 = scalar_lea.vmem [#allocation11], 4
    %653 = vst.msk [vmem:[%s652] sm:$0x3] %vm355, %v650
    %655 = vst [vmem:[#allocation1] ss:$4 sm:$0xff] %v645
    %v656 = vld.sshfl [vmem:[#allocation1] sm:$0xff pattern:$0x73625140]
    %657 = vrot.lane.b32.xlu0 %v656, 64
    %v658 = vpop.permute.xlu0 %657
    %s660 = scalar_lea.vmem [#allocation11], 10
    %661 = vst.msk [vmem:[%s660] sm:$0x3] %vm364, %v658
    %s662 = scalar_lea.vmem [#allocation2], 12
    %v663 = vld [vmem:[%s662] sm:$0x3]
    %664 = vst [vmem:[#allocation1] ss:$4 sm:$0xff] %v608
    %v665 = vld.sshfl [vmem:[#allocation1] sm:$0xff pattern:$0x73625140]
    %666 = vrot.lane.b32.xlu0 %v665, 32
    %v667 = vpop.permute.xlu0 %666
    %v668 = vsel %vm227, %v667, 0
    %670 = vmatpush.msra.mxu0 0.0
    %671 = vmatpush.msra.mxu0 0.0
    %672 = vmatpush.msra.mxu0 0.0
    %673 = vmatpush.msra.mxu0 0.0
    %674 = vmatpush.msra.mxu0 0.0
    %675 = vmatpush.msra.mxu0 0.0
    %676 = vmatpush.msra.mxu0 0.0
    %677 = vmatpush.msra.mxu0 0.0
    %678 = vmatpush.msra.mxu0 0.0
    %679 = vmatpush.msra.mxu0 0.0
    %680 = vmatpush.msra.mxu0 0.0
    %681 = vmatpush.msra.mxu0 0.0
    %682 = vmatpush.msra.mxu0 %v221
    %683 = vmatpush.msra.mxu0 %v220
    %684 = vmatpush.msra.mxu0 %v219
    %685 = vmatpush.msra.mxu0 %v218
    %686 = vmatmul.f32.gmra.mxu0 %v668
    %v687 = vpop.f32.mrf.mxu0
    %v688 = vadd.f32 0.0, %v687
    %689 = vdwg.mxu0
    %v690 = vadd.f32 %v663, %v688
    %s691 = scalar_lea.vmem [#allocation2], 16
    %v692 = vld [vmem:[%s691 + $0x2] sm:$0x3]
    %693 = vst [vmem:[#allocation1] ss:$4 sm:$0xff] %v645
    %v694 = vld.sshfl [vmem:[#allocation1] sm:$0xff pattern:$0x73625140]
    %695 = vrot.lane.b32.xlu0 %v694, 32
    %v696 = vpop.permute.xlu0 %695
    %v697 = vsel %vm227, %v696, 0
    %699 = vmatpush.msra.mxu0 0.0
    %700 = vmatpush.msra.mxu0 0.0
    %701 = vmatpush.msra.mxu0 0.0
    %702 = vmatpush.msra.mxu0 0.0
    %703 = vmatpush.msra.mxu0 0.0
    %704 = vmatpush.msra.mxu0 0.0
    %705 = vmatpush.msra.mxu0 0.0
    %706 = vmatpush.msra.mxu0 0.0
    %707 = vmatpush.msra.mxu0 0.0
    %708 = vmatpush.msra.mxu0 0.0
    %709 = vmatpush.msra.mxu0 0.0
    %710 = vmatpush.msra.mxu0 0.0
    %711 = vmatpush.msra.mxu0 %v225
    %712 = vmatpush.msra.mxu0 %v224
    %713 = vmatpush.msra.mxu0 %v223
    %714 = vmatpush.msra.mxu0 %v222
    %715 = vmatmul.f32.gmra.mxu0 %v697
    %v716 = vpop.f32.mrf.mxu0
    %v717 = vadd.f32 0.0, %v716
    %718 = vdwg.mxu0
    %v719 = vadd.f32 %v692, %v717
    %v720 = vxor.u32 %v690, 2147483648
    %v721 = vmul.f32 %v720, 1.442695
    %v722 = vpow.pop %v721
    %v723 = vadd.f32 %v722, 1.0
    %v724 = vrcp.pop %v723
    %v725 = vmul.f32 %v723, %v724
    %v726 = vsub.f32 1.0, %v725
    %v727 = vmul.f32 %v724, %v726
    %v728 = vadd.f32 %v724, %v727
    %vm729 = vweird.f32 %v723
    %vm730 = vweird.f32 %v724
    %vm731 = vmor %vm729, %vm730
    %v732 = vsel %vm731, %v724, %v728
    %v733 = vand.u32 2147483647, %v723
    %vm734 = vcmp.eq.f32.partialorder %v733, 8.507059e+37
    %v735 = vand.u32 %v723, 2147483648
    %v736 = vor.u32 1.1754944e-38, %v735
    %v737 = vsel %vm734, %v736, %v732
    %v738 = vmul.f32 1.0, %v737
    %v739 = vtanh.pop %v690
    %v740 = vmul.f32 %v738, %v602
    %742 = vrot.lane.b32.xlu0 %v739, 64
    %v743 = vpop.permute.xlu0 %742
    %v745 = vmul.f32 %v738, %v743
    %747 = vrot.lane.b32.xlu0 %v745, 32
    %v748 = vpop.permute.xlu0 %747
    %v750 = vadd.f32 %v740, %v748
    %v751 = vtanh.pop %v750
    %753 = vrot.lane.b32.xlu0 %v751, 64
    %v754 = vpop.permute.xlu0 %753
    %v756 = vmul.f32 %v738, %v754
    %v757 = vxor.u32 %v719, 2147483648
    %v758 = vmul.f32 %v757, 1.442695
    %v759 = vpow.pop %v758
    %v760 = vadd.f32 %v759, 1.0
    %v761 = vrcp.pop %v760
    %v762 = vmul.f32 %v760, %v761
    %v763 = vsub.f32 1.0, %v762
    %v764 = vmul.f32 %v761, %v763
    %v765 = vadd.f32 %v761, %v764
    %vm766 = vweird.f32 %v760
    %vm767 = vweird.f32 %v761
    %vm768 = vmor %vm766, %vm767
    %v769 = vsel %vm768, %v761, %v765
    %v770 = vand.u32 2147483647, %v760
    %vm771 = vcmp.eq.f32.partialorder %v770, 8.507059e+37
    %v772 = vand.u32 %v760, 2147483648
    %v773 = vor.u32 1.1754944e-38, %v772
    %v774 = vsel %vm771, %v773, %v769
    %v775 = vmul.f32 1.0, %v774
    %v776 = vtanh.pop %v719
    %v777 = vmul.f32 %v775, %v639
    %779 = vrot.lane.b32.xlu0 %v776, 64
    %v780 = vpop.permute.xlu0 %779
    %v782 = vmul.f32 %v775, %v780
    %784 = vrot.lane.b32.xlu0 %v782, 32
    %v785 = vpop.permute.xlu0 %784
    %v787 = vadd.f32 %v777, %v785
    %v788 = vtanh.pop %v787
    %790 = vrot.lane.b32.xlu0 %v788, 64
    %v791 = vpop.permute.xlu0 %790
    %v793 = vmul.f32 %v775, %v791
    %795 = vst [vmem:[#allocation1] ss:$4 sm:$0xff] %v756
    %v796 = vld.sshfl [vmem:[#allocation1] sm:$0xff pattern:$0x73625140]
    %797 = vrot.lane.b32.xlu0 %v796, 32
    %v798 = vpop.permute.xlu0 %797
    %s800 = scalar_lea.vmem [#allocation11], 6
    %801 = vst.msk [vmem:[%s800] sm:$0x3] %vm355, %v798
    %803 = vst [vmem:[#allocation1] ss:$4 sm:$0xff] %v793
    %v804 = vld.sshfl [vmem:[#allocation1] sm:$0xff pattern:$0x73625140]
    %805 = vrot.lane.b32.xlu0 %v804, 64
    %v806 = vpop.permute.xlu0 %805
    %s808 = scalar_lea.vmem [#allocation11], 8
    %809 = vst.msk [vmem:[%s808] sm:$0x3] %vm364, %v806
    %v810 = vld [vmem:[%s691] sm:$0x3]
    %811 = vst [vmem:[#allocation1] ss:$4 sm:$0xff] %v756
    %v812 = vld.sshfl [vmem:[#allocation1] sm:$0xff pattern:$0x73625140]
    %813 = vrot.lane.b32.xlu0 %v812, 32
    %v814 = vpop.permute.xlu0 %813
    %v815 = vsel %vm227, %v814, 0
    %817 = vmatpush.msra.mxu0 0.0
    %818 = vmatpush.msra.mxu0 0.0
    %819 = vmatpush.msra.mxu0 0.0
    %820 = vmatpush.msra.mxu0 0.0
    %821 = vmatpush.msra.mxu0 0.0
    %822 = vmatpush.msra.mxu0 0.0
    %823 = vmatpush.msra.mxu0 0.0
    %824 = vmatpush.msra.mxu0 0.0
    %825 = vmatpush.msra.mxu0 0.0
    %826 = vmatpush.msra.mxu0 0.0
    %827 = vmatpush.msra.mxu0 0.0
    %828 = vmatpush.msra.mxu0 0.0
    %829 = vmatpush.msra.mxu0 %v221
    %830 = vmatpush.msra.mxu0 %v220
    %831 = vmatpush.msra.mxu0 %v219
    %832 = vmatpush.msra.mxu0 %v218
    %833 = vmatmul.f32.gmra.mxu0 %v815
    %v834 = vpop.f32.mrf.mxu0
    %v835 = vadd.f32 0.0, %v834
    %836 = vdwg.mxu0
    %v837 = vadd.f32 %v810, %v835
    %v838 = vld [vmem:[%s662 + $0x2] sm:$0x3]
    %839 = vst [vmem:[#allocation1] ss:$4 sm:$0xff] %v793
    %v840 = vld.sshfl [vmem:[#allocation1] sm:$0xff pattern:$0x73625140]
    %841 = vrot.lane.b32.xlu0 %v840, 32
    %v842 = vpop.permute.xlu0 %841
    %v843 = vsel %vm227, %v842, 0
    %845 = vmatpush.msra.mxu0 0.0
    %846 = vmatpush.msra.mxu0 0.0
    %847 = vmatpush.msra.mxu0 0.0
    %848 = vmatpush.msra.mxu0 0.0
    %849 = vmatpush.msra.mxu0 0.0
    %850 = vmatpush.msra.mxu0 0.0
    %851 = vmatpush.msra.mxu0 0.0
    %852 = vmatpush.msra.mxu0 0.0
    %853 = vmatpush.msra.mxu0 0.0
    %854 = vmatpush.msra.mxu0 0.0
    %855 = vmatpush.msra.mxu0 0.0
    %856 = vmatpush.msra.mxu0 0.0
    %857 = vmatpush.msra.mxu0 %v225
    %858 = vmatpush.msra.mxu0 %v224
    %859 = vmatpush.msra.mxu0 %v223
    %860 = vmatpush.msra.mxu0 %v222
    %861 = vmatmul.f32.gmra.mxu0 %v843
    %v862 = vpop.f32.mrf.mxu0
    %v863 = vadd.f32 0.0, %v862
    %864 = vdwg.mxu0
    %v865 = vadd.f32 %v838, %v863
    %v866 = vxor.u32 %v837, 2147483648
    %v867 = vmul.f32 %v866, 1.442695
    %v868 = vpow.pop %v867
    %v869 = vadd.f32 %v868, 1.0
    %v870 = vrcp.pop %v869
    %v871 = vmul.f32 %v869, %v870
    %v872 = vsub.f32 1.0, %v871
    %v873 = vmul.f32 %v870, %v872
    %v874 = vadd.f32 %v870, %v873
    %vm875 = vweird.f32 %v869
    %vm876 = vweird.f32 %v870
    %vm877 = vmor %vm875, %vm876
    %v878 = vsel %vm877, %v870, %v874
    %v879 = vand.u32 2147483647, %v869
    %vm880 = vcmp.eq.f32.partialorder %v879, 8.507059e+37
    %v881 = vand.u32 %v869, 2147483648
    %v882 = vor.u32 1.1754944e-38, %v881
    %v883 = vsel %vm880, %v882, %v878
    %v884 = vmul.f32 1.0, %v883
    %v885 = vtanh.pop %v837
    %v886 = vmul.f32 %v884, %v750
    %888 = vrot.lane.b32.xlu0 %v885, 64
    %v889 = vpop.permute.xlu0 %888
    %v891 = vmul.f32 %v884, %v889
    %893 = vrot.lane.b32.xlu0 %v891, 32
    %v894 = vpop.permute.xlu0 %893
    %v896 = vadd.f32 %v886, %v894
    %v897 = vtanh.pop %v896
    %899 = vrot.lane.b32.xlu0 %v897, 64
    %v900 = vpop.permute.xlu0 %899
    %v902 = vmul.f32 %v884, %v900
    %v903 = vxor.u32 %v865, 2147483648
    %v904 = vmul.f32 %v903, 1.442695
    %v905 = vpow.pop %v904
    %v906 = vadd.f32 %v905, 1.0
    %v907 = vrcp.pop %v906
    %v908 = vmul.f32 %v906, %v907
    %v909 = vsub.f32 1.0, %v908
    %v910 = vmul.f32 %v907, %v909
    %v911 = vadd.f32 %v907, %v910
    %vm912 = vweird.f32 %v906
    %vm913 = vweird.f32 %v907
    %vm914 = vmor %vm912, %vm913
    %v915 = vsel %vm914, %v907, %v911
    %v916 = vand.u32 2147483647, %v906
    %vm917 = vcmp.eq.f32.partialorder %v916, 8.507059e+37
    %v918 = vand.u32 %v906, 2147483648
    %v919 = vor.u32 1.1754944e-38, %v918
    %v920 = vsel %vm917, %v919, %v915
    %v921 = vmul.f32 1.0, %v920
    %v922 = vtanh.pop %v865
    %v923 = vmul.f32 %v921, %v787
    %925 = vrot.lane.b32.xlu0 %v922, 64
    %v926 = vpop.permute.xlu0 %925
    %v928 = vmul.f32 %v921, %v926
    %930 = vrot.lane.b32.xlu0 %v928, 32
    %v931 = vpop.permute.xlu0 %930
    %v933 = vadd.f32 %v923, %v931
    %v934 = vtanh.pop %v933
    %936 = vrot.lane.b32.xlu0 %v934, 64
    %v937 = vpop.permute.xlu0 %936
    %v939 = vmul.f32 %v921, %v937
    %941 = vst [vmem:[#allocation1] ss:$4 sm:$0xff] %v902
    %v942 = vld.sshfl [vmem:[#allocation1] sm:$0xff pattern:$0x73625140]
    %943 = vrot.lane.b32.xlu0 %v942, 32
    %v944 = vpop.permute.xlu0 %943
    %946 = vst.msk [vmem:[%s808] sm:$0x3] %vm355, %v944
    %948 = vst [vmem:[#allocation1] ss:$4 sm:$0xff] %v939
    %v949 = vld.sshfl [vmem:[#allocation1] sm:$0xff pattern:$0x73625140]
    %950 = vrot.lane.b32.xlu0 %v949, 64
    %v951 = vpop.permute.xlu0 %950
    %953 = vst.msk [vmem:[%s800] sm:$0x3] %vm364, %v951
    %v954 = vld [vmem:[%s543] sm:$0x3]
    %955 = vst [vmem:[#allocation1] ss:$4 sm:$0xff] %v902
    %v956 = vld.sshfl [vmem:[#allocation1] sm:$0xff pattern:$0x73625140]
    %957 = vrot.lane.b32.xlu0 %v956, 32
    %v958 = vpop.permute.xlu0 %957
    %v959 = vsel %vm227, %v958, 0
    %961 = vmatpush.msra.mxu0 0.0
    %962 = vmatpush.msra.mxu0 0.0
    %963 = vmatpush.msra.mxu0 0.0
    %964 = vmatpush.msra.mxu0 0.0
    %965 = vmatpush.msra.mxu0 0.0
    %966 = vmatpush.msra.mxu0 0.0
    %967 = vmatpush.msra.mxu0 0.0
    %968 = vmatpush.msra.mxu0 0.0
    %969 = vmatpush.msra.mxu0 0.0
    %970 = vmatpush.msra.mxu0 0.0
    %971 = vmatpush.msra.mxu0 0.0
    %972 = vmatpush.msra.mxu0 0.0
    %973 = vmatpush.msra.mxu0 %v221
    %974 = vmatpush.msra.mxu0 %v220
    %975 = vmatpush.msra.mxu0 %v219
    %976 = vmatpush.msra.mxu0 %v218
    %977 = vmatmul.f32.gmra.mxu0 %v959
    %v978 = vpop.f32.mrf.mxu0
    %v979 = vadd.f32 0.0, %v978
    %980 = vdwg.mxu0
    %v981 = vadd.f32 %v954, %v979
    %v982 = vld [vmem:[%s514 + $0x2] sm:$0x3]
    %983 = vst [vmem:[#allocation1] ss:$4 sm:$0xff] %v939
    %v984 = vld.sshfl [vmem:[#allocation1] sm:$0xff pattern:$0x73625140]
    %985 = vrot.lane.b32.xlu0 %v984, 32
    %v986 = vpop.permute.xlu0 %985
    %v987 = vsel %vm227, %v986, 0
    %989 = vmatpush.msra.mxu0 0.0
    %990 = vmatpush.msra.mxu0 0.0
    %991 = vmatpush.msra.mxu0 0.0
    %992 = vmatpush.msra.mxu0 0.0
    %993 = vmatpush.msra.mxu0 0.0
    %994 = vmatpush.msra.mxu0 0.0
    %995 = vmatpush.msra.mxu0 0.0
    %996 = vmatpush.msra.mxu0 0.0
    %997 = vmatpush.msra.mxu0 0.0
    %998 = vmatpush.msra.mxu0 0.0
    %999 = vmatpush.msra.mxu0 0.0
    %1000 = vmatpush.msra.mxu0 0.0
    %1001 = vmatpush.msra.mxu0 %v225
    %1002 = vmatpush.msra.mxu0 %v224
    %1003 = vmatpush.msra.mxu0 %v223
    %1004 = vmatpush.msra.mxu0 %v222
    %1005 = vmatmul.f32.gmra.mxu0 %v987
    %v1006 = vpop.f32.mrf.mxu0
    %v1007 = vadd.f32 0.0, %v1006
    %1008 = vdwg.mxu0
    %v1009 = vadd.f32 %v982, %v1007
    %v1010 = vxor.u32 %v981, 2147483648
    %v1011 = vmul.f32 %v1010, 1.442695
    %v1012 = vpow.pop %v1011
    %v1013 = vadd.f32 %v1012, 1.0
    %v1014 = vrcp.pop %v1013
    %v1015 = vmul.f32 %v1013, %v1014
    %v1016 = vsub.f32 1.0, %v1015
    %v1017 = vmul.f32 %v1014, %v1016
    %v1018 = vadd.f32 %v1014, %v1017
    %vm1019 = vweird.f32 %v1013
    %vm1020 = vweird.f32 %v1014
    %vm1021 = vmor %vm1019, %vm1020
    %v1022 = vsel %vm1021, %v1014, %v1018
    %v1023 = vand.u32 2147483647, %v1013
    %vm1024 = vcmp.eq.f32.partialorder %v1023, 8.507059e+37
    %v1025 = vand.u32 %v1013, 2147483648
    %v1026 = vor.u32 1.1754944e-38, %v1025
    %v1027 = vsel %vm1024, %v1026, %v1022
    %v1028 = vmul.f32 1.0, %v1027
    %v1029 = vtanh.pop %v981
    %v1030 = vmul.f32 %v1028, %v896
    %1032 = vrot.lane.b32.xlu0 %v1029, 64
    %v1033 = vpop.permute.xlu0 %1032
    %v1035 = vmul.f32 %v1028, %v1033
    %1037 = vrot.lane.b32.xlu0 %v1035, 32
    %v1038 = vpop.permute.xlu0 %1037
    %v1040 = vadd.f32 %v1030, %v1038
    %v1041 = vtanh.pop %v1040
    %1043 = vrot.lane.b32.xlu0 %v1041, 64
    %v1044 = vpop.permute.xlu0 %1043
    %v1046 = vmul.f32 %v1028, %v1044
    %v1047 = vxor.u32 %v1009, 2147483648
    %v1048 = vmul.f32 %v1047, 1.442695
    %v1049 = vpow.pop %v1048
    %v1050 = vadd.f32 %v1049, 1.0
    %v1051 = vrcp.pop %v1050
    %v1052 = vmul.f32 %v1050, %v1051
    %v1053 = vsub.f32 1.0, %v1052
    %v1054 = vmul.f32 %v1051, %v1053
    %v1055 = vadd.f32 %v1051, %v1054
    %vm1056 = vweird.f32 %v1050
    %vm1057 = vweird.f32 %v1051
    %vm1058 = vmor %vm1056, %vm1057
    %v1059 = vsel %vm1058, %v1051, %v1055
    %v1060 = vand.u32 2147483647, %v1050
    %vm1061 = vcmp.eq.f32.partialorder %v1060, 8.507059e+37
    %v1062 = vand.u32 %v1050, 2147483648
    %v1063 = vor.u32 1.1754944e-38, %v1062
    %v1064 = vsel %vm1061, %v1063, %v1059
    %v1065 = vmul.f32 1.0, %v1064
    %v1066 = vtanh.pop %v1009
    %v1067 = vmul.f32 %v1065, %v933
    %1069 = vrot.lane.b32.xlu0 %v1066, 64
    %v1070 = vpop.permute.xlu0 %1069
    %v1072 = vmul.f32 %v1065, %v1070
    %1074 = vrot.lane.b32.xlu0 %v1072, 32
    %v1075 = vpop.permute.xlu0 %1074
    %v1077 = vadd.f32 %v1067, %v1075
    %v1078 = vtanh.pop %v1077
    %1080 = vrot.lane.b32.xlu0 %v1078, 64
    %v1081 = vpop.permute.xlu0 %1080
    %v1083 = vmul.f32 %v1065, %v1081
    %1085 = vst [vmem:[#allocation1] ss:$4 sm:$0xff] %v1046
    %v1086 = vld.sshfl [vmem:[#allocation1] sm:$0xff pattern:$0x73625140]
    %1087 = vrot.lane.b32.xlu0 %v1086, 32
    %v1088 = vpop.permute.xlu0 %1087
    %1090 = vst.msk [vmem:[%s660] sm:$0x3] %vm355, %v1088
    %1092 = vst [vmem:[#allocation1] ss:$4 sm:$0xff] %v1083
    %v1093 = vld.sshfl [vmem:[#allocation1] sm:$0xff pattern:$0x73625140]
    %1094 = vrot.lane.b32.xlu0 %v1093, 64
    %v1095 = vpop.permute.xlu0 %1094
    %1097 = vst.msk [vmem:[%s652] sm:$0x3] %vm364, %v1095
    %v1098 = vld [vmem:[%s395] sm:$0x3]
    %1099 = vst [vmem:[#allocation1] ss:$4 sm:$0xff] %v1046
    %v1100 = vld.sshfl [vmem:[#allocation1] sm:$0xff pattern:$0x73625140]
    %1101 = vrot.lane.b32.xlu0 %v1100, 32
    %v1102 = vpop.permute.xlu0 %1101
    %v1103 = vsel %vm227, %v1102, 0
    %1105 = vmatpush.msra.mxu0 0.0
    %1106 = vmatpush.msra.mxu0 0.0
    %1107 = vmatpush.msra.mxu0 0.0
    %1108 = vmatpush.msra.mxu0 0.0
    %1109 = vmatpush.msra.mxu0 0.0
    %1110 = vmatpush.msra.mxu0 0.0
    %1111 = vmatpush.msra.mxu0 0.0
    %1112 = vmatpush.msra.mxu0 0.0
    %1113 = vmatpush.msra.mxu0 0.0
    %1114 = vmatpush.msra.mxu0 0.0
    %1115 = vmatpush.msra.mxu0 0.0
    %1116 = vmatpush.msra.mxu0 0.0
    %1117 = vmatpush.msra.mxu0 %v221
    %1118 = vmatpush.msra.mxu0 %v220
    %1119 = vmatpush.msra.mxu0 %v219
    %1120 = vmatpush.msra.mxu0 %v218
    %1121 = vmatmul.f32.gmra.mxu0 %v1103
    %v1122 = vpop.f32.mrf.mxu0
    %v1123 = vadd.f32 0.0, %v1122
    %1124 = vdwg.mxu0
    %v1125 = vadd.f32 %v1098, %v1123
    %v1126 = vld [vmem:[%s366 + $0x2] sm:$0x3]
    %1127 = vst [vmem:[#allocation1] ss:$4 sm:$0xff] %v1083
    %v1128 = vld.sshfl [vmem:[#allocation1] sm:$0xff pattern:$0x73625140]
    %1129 = vrot.lane.b32.xlu0 %v1128, 32
    %v1130 = vpop.permute.xlu0 %1129
    %v1131 = vsel %vm227, %v1130, 0
    %1133 = vmatpush.msra.mxu0 0.0
    %1134 = vmatpush.msra.mxu0 0.0
    %1135 = vmatpush.msra.mxu0 0.0
    %1136 = vmatpush.msra.mxu0 0.0
    %1137 = vmatpush.msra.mxu0 0.0
    %1138 = vmatpush.msra.mxu0 0.0
    %1139 = vmatpush.msra.mxu0 0.0
    %1140 = vmatpush.msra.mxu0 0.0
    %1141 = vmatpush.msra.mxu0 0.0
    %1142 = vmatpush.msra.mxu0 0.0
    %1143 = vmatpush.msra.mxu0 0.0
    %1144 = vmatpush.msra.mxu0 0.0
    %1145 = vmatpush.msra.mxu0 %v225
    %1146 = vmatpush.msra.mxu0 %v224
    %1147 = vmatpush.msra.mxu0 %v223
    %1148 = vmatpush.msra.mxu0 %v222
    %1149 = vmatmul.f32.gmra.mxu0 %v1131
    %v1150 = vpop.f32.mrf.mxu0
    %v1151 = vadd.f32 0.0, %v1150
    %1152 = vdwg.mxu0
    %v1153 = vadd.f32 %v1126, %v1151
    %v1154 = vxor.u32 %v1125, 2147483648
    %v1155 = vmul.f32 %v1154, 1.442695
    %v1156 = vpow.pop %v1155
    %v1157 = vadd.f32 %v1156, 1.0
    %v1158 = vrcp.pop %v1157
    %v1159 = vmul.f32 %v1157, %v1158
    %v1160 = vsub.f32 1.0, %v1159
    %v1161 = vmul.f32 %v1158, %v1160
    %v1162 = vadd.f32 %v1158, %v1161
    %vm1163 = vweird.f32 %v1157
    %vm1164 = vweird.f32 %v1158
    %vm1165 = vmor %vm1163, %vm1164
    %v1166 = vsel %vm1165, %v1158, %v1162
    %v1167 = vand.u32 2147483647, %v1157
    %vm1168 = vcmp.eq.f32.partialorder %v1167, 8.507059e+37
    %v1169 = vand.u32 %v1157, 2147483648
    %v1170 = vor.u32 1.1754944e-38, %v1169
    %v1171 = vsel %vm1168, %v1170, %v1166
    %v1172 = vmul.f32 1.0, %v1171
    %v1173 = vtanh.pop %v1125
    %v1174 = vmul.f32 %v1172, %v1040
    %1176 = vrot.lane.b32.xlu0 %v1173, 64
    %v1177 = vpop.permute.xlu0 %1176
    %v1179 = vmul.f32 %v1172, %v1177
    %1181 = vrot.lane.b32.xlu0 %v1179, 32
    %v1182 = vpop.permute.xlu0 %1181
    %v1184 = vadd.f32 %v1174, %v1182
    %v1185 = vtanh.pop %v1184
    %1187 = vrot.lane.b32.xlu0 %v1185, 64
    %v1188 = vpop.permute.xlu0 %1187
    %v1190 = vmul.f32 %v1172, %v1188
    %v1191 = vxor.u32 %v1153, 2147483648
    %v1192 = vmul.f32 %v1191, 1.442695
    %v1193 = vpow.pop %v1192
    %v1194 = vadd.f32 %v1193, 1.0
    %v1195 = vrcp.pop %v1194
    %v1196 = vmul.f32 %v1194, %v1195
    %v1197 = vsub.f32 1.0, %v1196
    %v1198 = vmul.f32 %v1195, %v1197
    %v1199 = vadd.f32 %v1195, %v1198
    %vm1200 = vweird.f32 %v1194
    %vm1201 = vweird.f32 %v1195
    %vm1202 = vmor %vm1200, %vm1201
    %v1203 = vsel %vm1202, %v1195, %v1199
    %v1204 = vand.u32 2147483647, %v1194
    %vm1205 = vcmp.eq.f32.partialorder %v1204, 8.507059e+37
    %v1206 = vand.u32 %v1194, 2147483648
    %v1207 = vor.u32 1.1754944e-38, %v1206
    %v1208 = vsel %vm1205, %v1207, %v1203
    %v1209 = vmul.f32 1.0, %v1208
    %v1210 = vtanh.pop %v1153
    %v1211 = vmul.f32 %v1209, %v1077
    %1213 = vrot.lane.b32.xlu0 %v1210, 64
    %v1214 = vpop.permute.xlu0 %1213
    %v1216 = vmul.f32 %v1209, %v1214
    %1218 = vrot.lane.b32.xlu0 %v1216, 32
    %v1219 = vpop.permute.xlu0 %1218
    %v1221 = vadd.f32 %v1211, %v1219
    %v1222 = vtanh.pop %v1221
    %1224 = vrot.lane.b32.xlu0 %v1222, 64
    %v1225 = vpop.permute.xlu0 %1224
    %v1227 = vmul.f32 %v1209, %v1225
    %1229 = vst [vmem:[#allocation1] ss:$4 sm:$0xff] %v1190
    %v1230 = vld.sshfl [vmem:[#allocation1] sm:$0xff pattern:$0x73625140]
    %1231 = vrot.lane.b32.xlu0 %v1230, 32
    %v1232 = vpop.permute.xlu0 %1231
    %1234 = vst.msk [vmem:[%s512] sm:$0x3] %vm355, %v1232
    %1236 = vst [vmem:[#allocation1] ss:$4 sm:$0xff] %v1227
    %v1237 = vld.sshfl [vmem:[#allocation1] sm:$0xff pattern:$0x73625140]
    %1238 = vrot.lane.b32.xlu0 %v1237, 64
    %v1239 = vpop.permute.xlu0 %1238
    %1241 = vst.msk [vmem:[%s504] sm:$0x3] %vm364, %v1239
    %v1242 = vld [vmem:[%s252] sm:$0x3]
    %1243 = vst [vmem:[#allocation1] ss:$4 sm:$0xff] %v1190
    %v1244 = vld.sshfl [vmem:[#allocation1] sm:$0xff pattern:$0x73625140]
    %1245 = vrot.lane.b32.xlu0 %v1244, 32
    %v1246 = vpop.permute.xlu0 %1245
    %v1247 = vsel %vm227, %v1246, 0
    %1249 = vmatpush.msra.mxu0 0.0
    %1250 = vmatpush.msra.mxu0 0.0
    %1251 = vmatpush.msra.mxu0 0.0
    %1252 = vmatpush.msra.mxu0 0.0
    %1253 = vmatpush.msra.mxu0 0.0
    %1254 = vmatpush.msra.mxu0 0.0
    %1255 = vmatpush.msra.mxu0 0.0
    %1256 = vmatpush.msra.mxu0 0.0
    %1257 = vmatpush.msra.mxu0 0.0
    %1258 = vmatpush.msra.mxu0 0.0
    %1259 = vmatpush.msra.mxu0 0.0
    %1260 = vmatpush.msra.mxu0 0.0
    %1261 = vmatpush.msra.mxu0 %v221
    %1262 = vmatpush.msra.mxu0 %v220
    %1263 = vmatpush.msra.mxu0 %v219
    %1264 = vmatpush.msra.mxu0 %v218
    %1265 = vmatmul.f32.gmra.mxu0 %v1247
    %v1266 = vpop.f32.mrf.mxu0
    %v1267 = vadd.f32 0.0, %v1266
    %1268 = vdwg.mxu0
    %v1269 = vadd.f32 %v1242, %v1267
    %v1270 = vld [vmem:[#allocation2 + $0x2] sm:$0x3]
    %1271 = vst [vmem:[#allocation1] ss:$4 sm:$0xff] %v1227
    %v1272 = vld.sshfl [vmem:[#allocation1] sm:$0xff pattern:$0x73625140]
    %1273 = vrot.lane.b32.xlu0 %v1272, 32
    %v1274 = vpop.permute.xlu0 %1273
    %v1275 = vsel %vm227, %v1274, 0
    %1277 = vmatpush.msra.mxu0 0.0
    %1278 = vmatpush.msra.mxu0 0.0
    %1279 = vmatpush.msra.mxu0 0.0
    %1280 = vmatpush.msra.mxu0 0.0
    %1281 = vmatpush.msra.mxu0 0.0
    %1282 = vmatpush.msra.mxu0 0.0
    %1283 = vmatpush.msra.mxu0 0.0
    %1284 = vmatpush.msra.mxu0 0.0
    %1285 = vmatpush.msra.mxu0 0.0
    %1286 = vmatpush.msra.mxu0 0.0
    %1287 = vmatpush.msra.mxu0 0.0
    %1288 = vmatpush.msra.mxu0 0.0
    %1289 = vmatpush.msra.mxu0 %v225
    %1290 = vmatpush.msra.mxu0 %v224
    %1291 = vmatpush.msra.mxu0 %v223
    %1292 = vmatpush.msra.mxu0 %v222
    %1293 = vmatmul.f32.gmra.mxu0 %v1275
    %v1294 = vpop.f32.mrf.mxu0
    %v1295 = vadd.f32 0.0, %v1294
    %1296 = vdwg.mxu0
    %v1297 = vadd.f32 %v1270, %v1295
    %v1298 = vxor.u32 %v1269, 2147483648
    %v1299 = vmul.f32 %v1298, 1.442695
    %v1300 = vpow.pop %v1299
    %v1301 = vadd.f32 %v1300, 1.0
    %v1302 = vrcp.pop %v1301
    %v1303 = vmul.f32 %v1301, %v1302
    %v1304 = vsub.f32 1.0, %v1303
    %v1305 = vmul.f32 %v1302, %v1304
    %v1306 = vadd.f32 %v1302, %v1305
    %vm1307 = vweird.f32 %v1301
    %vm1308 = vweird.f32 %v1302
    %vm1309 = vmor %vm1307, %vm1308
    %v1310 = vsel %vm1309, %v1302, %v1306
    %v1311 = vand.u32 2147483647, %v1301
    %vm1312 = vcmp.eq.f32.partialorder %v1311, 8.507059e+37
    %v1313 = vand.u32 %v1301, 2147483648
    %v1314 = vor.u32 1.1754944e-38, %v1313
    %v1315 = vsel %vm1312, %v1314, %v1310
    %v1316 = vmul.f32 1.0, %v1315
    %v1317 = vtanh.pop %v1269
    %v1318 = vmul.f32 %v1316, %v1184
    %1320 = vrot.lane.b32.xlu0 %v1317, 64
    %v1321 = vpop.permute.xlu0 %1320
    %v1323 = vmul.f32 %v1316, %v1321
    %1325 = vrot.lane.b32.xlu0 %v1323, 32
    %v1326 = vpop.permute.xlu0 %1325
    %v1328 = vadd.f32 %v1318, %v1326
    %v1329 = vtanh.pop %v1328
    %1331 = vrot.lane.b32.xlu0 %v1329, 64
    %v1332 = vpop.permute.xlu0 %1331
    %v1334 = vmul.f32 %v1316, %v1332
    %v1335 = vxor.u32 %v1297, 2147483648
    %v1336 = vmul.f32 %v1335, 1.442695
    %v1337 = vpow.pop %v1336
    %v1338 = vadd.f32 %v1337, 1.0
    %v1339 = vrcp.pop %v1338
    %v1340 = vmul.f32 %v1338, %v1339
    %v1341 = vsub.f32 1.0, %v1340
    %v1342 = vmul.f32 %v1339, %v1341
    %v1343 = vadd.f32 %v1339, %v1342
    %vm1344 = vweird.f32 %v1338
    %vm1345 = vweird.f32 %v1339
    %vm1346 = vmor %vm1344, %vm1345
    %v1347 = vsel %vm1346, %v1339, %v1343
    %v1348 = vand.u32 2147483647, %v1338
    %vm1349 = vcmp.eq.f32.partialorder %v1348, 8.507059e+37
    %v1350 = vand.u32 %v1338, 2147483648
    %v1351 = vor.u32 1.1754944e-38, %v1350
    %v1352 = vsel %vm1349, %v1351, %v1347
    %v1353 = vmul.f32 1.0, %v1352
    %v1354 = vtanh.pop %v1297
    %v1355 = vmul.f32 %v1353, %v1221
    %1357 = vrot.lane.b32.xlu0 %v1354, 64
    %v1358 = vpop.permute.xlu0 %1357
    %v1360 = vmul.f32 %v1353, %v1358
    %1362 = vrot.lane.b32.xlu0 %v1360, 32
    %v1363 = vpop.permute.xlu0 %1362
    %v1365 = vadd.f32 %v1355, %v1363
    %v1366 = vtanh.pop %v1365
    %1368 = vrot.lane.b32.xlu0 %v1366, 64
    %v1369 = vpop.permute.xlu0 %1368
    %v1371 = vmul.f32 %v1353, %v1369
    %1373 = vst [vmem:[#allocation1] ss:$4 sm:$0xff] %v1334
    %v1374 = vld.sshfl [vmem:[#allocation1] sm:$0xff pattern:$0x73625140]
    %1375 = vrot.lane.b32.xlu0 %v1374, 32
    %v1376 = vpop.permute.xlu0 %1375
    %1378 = vst.msk [vmem:[%s363] sm:$0x3] %vm355, %v1376
    %1380 = vst [vmem:[#allocation1] ss:$4 sm:$0xff] %v1371
    %v1381 = vld.sshfl [vmem:[#allocation1] sm:$0xff pattern:$0x73625140]
    %1382 = vrot.lane.b32.xlu0 %v1381, 64
    %v1383 = vpop.permute.xlu0 %1382
    %1385 = vst.msk [vmem:[#allocation11] sm:$0x3] %vm364, %v1383
    // Predicated region
    $region38: #{tpu_custom_call.1} parent=1 // pred_check
      _
    $region39: #{tpu_custom_call.1} parent=1 // pred_check_branch
      %1387 = sbr.rel (0) target = $region41
    $region40: #{tpu_custom_call.1} parent=1 // pred_region
      %1389 = vsyncadd [#allocation5], 0
      %s1390 = sshll.u32 [#allocation11], 4
      %s1391 = int_to_ptr.vmem [resolvable:$true] %s1390
      %s1392 = sshll.u32 %s5, 4
      %s1393 = int_to_ptr.hbm [resolvable:$true] %s1392
      %1398 = dma.vmem_to_hbm [thread:$0]  %s1391, 256, %s1393, [#allocation5], 32, 32, 2
    $region41: #{tpu_custom_call.1} parent=1 // pred_fallthru
      _
    // Predicated region
    $region42: #{tpu_custom_call.1} parent=1 // pred_check
      _
    $region43: #{tpu_custom_call.1} parent=1 // pred_check_branch
      %1400 = sbr.rel (0) target = $region45
    $region44: #{tpu_custom_call.1} parent=1 // pred_region
      %1402 = dma.done [#allocation5], 256
    $region45: #{tpu_custom_call.1} parent=1 // pred_fallthru
      _
    %1403 = vsyncpa [#allocation4], 1
    %1404 = vsyncpa [#allocation7], 1
    %1405 = vsyncpa [#allocation10], 1
    %1406 = vsyncpa [#allocation5], 1

</llo_original>
